<compile_context>
chip_gen: v5e
topology: v5e:2x2
jax: 0.10.0
libtpu: 0.0.40
codegen_flags: <defaults>
</compile_context>

<pallas_src>
import functools

import jax
import jax.numpy as jnp
from jax import lax
from jax.experimental import pallas as pl
from jax.experimental.pallas import tpu as pltpu


# ----------------------------------------------------------------------------
# In-kernel helper: build im2col patches in the lane-dense (H, W*C) layout.
# ----------------------------------------------------------------------------
def _shifted_taps(a, C):
    """a: (B, H, W*C).  Returns (B*H, 9*W*C) im2col patches for a 3x3 SAME
    conv.  ky taps are sublane (row) shifts, kx taps are +-C lane shifts,
    zero-filled at the image border (no external padding needed)."""
    B, H, L = a.shape
    zrow = jnp.zeros((B, 1, L), a.dtype)
    rows = (
        jnp.concatenate([zrow, a[:, :H - 1, :]], axis=1),   # ky=0 -> x[h-1]
        a,                                                   # ky=1 -> x[h]
        jnp.concatenate([a[:, 1:, :], zrow], axis=1),        # ky=2 -> x[h+1]
    )
    zlane = jnp.zeros((B, H, C), a.dtype)
    taps = []
    for r in rows:
        taps.append(jnp.concatenate([zlane, r[:, :, :L - C]], axis=-1))  # kx=0
        taps.append(r)                                                   # kx=1
        taps.append(jnp.concatenate([r[:, :, C:], zlane], axis=-1))      # kx=2
    return jnp.concatenate(taps, axis=-1).reshape(B * H, 9 * L)


# ----------------------------------------------------------------------------
# Pallas kernel: a batch tile per grid step, everything fused, no scratch.
# ----------------------------------------------------------------------------
def basic_transform_kernel(x_ref, w1_ref, w2_ref,
                           s1_ref, b1_ref, s2_ref, b2_ref,
                           o_ref, *, C):
    B, H, L = x_ref.shape
    x = x_ref[...]                                        # (B, H, L) f32

    # ---- conv1: single im2col matmul (bf16 MXU inputs, f32 accumulate) ----
    p1 = _shifted_taps(x, C).astype(jnp.bfloat16)         # (B*H, 9*L)
    y1 = jnp.dot(p1, w1_ref[...], preferred_element_type=jnp.float32)

    # ---- bn1 (folded, f32) + SiLU (f32) ----
    y1 = y1 * s1_ref[...] + b1_ref[...]
    y1 = y1 * jax.nn.sigmoid(y1)

    # ---- conv2 ----
    p2 = _shifted_taps(y1.reshape(B, H, L), C).astype(jnp.bfloat16)
    y2 = jnp.dot(p2, w2_ref[...], preferred_element_type=jnp.float32)

    # ---- bn2 (folded) + residual + SiLU ----
    y2 = y2 * s2_ref[...] + b2_ref[...]
    y2 = y2 + x.reshape(B * H, L)
    y2 = y2 * jax.nn.sigmoid(y2)

    o_ref[...] = y2.reshape(B, H, L).astype(o_ref.dtype)  # lane-dense store


# ----------------------------------------------------------------------------
# Wrapper
# ----------------------------------------------------------------------------
def basic_transform(x_lane, w1_big, w2_big, s1, b1, s2, b2, *, C,
                    batch_tile=1):
    """x_lane: (N, H, W*C) f32; w*_big: (9*W*C, W*C) bf16; s*/b*: (1, W*C)."""
    N, H, L = x_lane.shape
    assert N % batch_tile == 0
    K2L = w1_big.shape[0]

    kernel = functools.partial(basic_transform_kernel, C=C)
    return pl.pallas_call(
        kernel,
        out_shape=jax.ShapeDtypeStruct((N, H, L), jnp.float32),
        grid_spec=pltpu.PrefetchScalarGridSpec(
            num_scalar_prefetch=0,
            grid=(N // batch_tile,),
            in_specs=[
                pl.BlockSpec((batch_tile, H, L), lambda b: (b, 0, 0)),
                pl.BlockSpec((K2L, L), lambda b: (0, 0)),
                pl.BlockSpec((K2L, L), lambda b: (0, 0)),
                pl.BlockSpec((1, L), lambda b: (0, 0)),
                pl.BlockSpec((1, L), lambda b: (0, 0)),
                pl.BlockSpec((1, L), lambda b: (0, 0)),
                pl.BlockSpec((1, L), lambda b: (0, 0)),
            ],
            out_specs=pl.BlockSpec((batch_tile, H, L), lambda b: (b, 0, 0)),
        ),
        compiler_params=pltpu.CompilerParams(
            dimension_semantics=("parallel",)),
    )(x_lane, w1_big, w2_big, s1, b1, s2, b2)


# ----------------------------------------------------------------------------
# Parameter helpers
# ----------------------------------------------------------------------------
def grouped_weight_to_dense(w_pt, groups):
    """(Cout, Cin//g, K, K) PyTorch grouped-conv weight -> (K*K, Cin, Cout)
    dense block-diagonal per-tap weight (zeros across groups)."""
    Cout, Cin_g, K, _ = w_pt.shape
    Cin = Cin_g * groups
    Cout_g = Cout // groups
    dense = jnp.zeros((K, K, Cin, Cout), jnp.float32)
    for g in range(groups):
        blk = w_pt[g * Cout_g:(g + 1) * Cout_g]        # (Cout_g, Cin_g, K, K)
        blk = jnp.transpose(blk, (2, 3, 1, 0))          # (K, K, Cin_g, Cout_g)
        dense = dense.at[:, :,
                         g * Cin_g:(g + 1) * Cin_g,
                         g * Cout_g:(g + 1) * Cout_g].set(blk)
    return dense.reshape(K * K, Cin, Cout)


def lane_conv_weight(w_dense, W, dtype=jnp.bfloat16):
    """(9, Cin, Cout) per-tap weight -> (9*W*Cin, W*Cout) weight for the
    lane-dense (H, W*C) layout: block-diagonal over the W positions/tap."""
    K2, Cin, Cout = w_dense.shape
    eye = jnp.eye(W, dtype=w_dense.dtype)
    # Wbig[t, w', ci, w, co] = eye[w', w] * w_dense[t, ci, co]
    wbig = jnp.einsum('ab,tio->taibo', eye, w_dense)    # (9, W, Cin, W, Cout)
    return wbig.reshape(K2 * W * Cin, W * Cout).astype(dtype)


def fold_bn_lane(gamma, beta, mean, var, W, eps=1e-5):
    """Inference-mode BN folded to (1, W*C) scale/bias tiled across W."""
    scale = gamma / jnp.sqrt(var + eps)
    bias = beta - mean * scale
    return jnp.tile(scale, W)[None, :], jnp.tile(bias, W)[None, :]


# ----------------------------------------------------------------------------
# Pure-JAX reference (for correctness check)
# ----------------------------------------------------------------------------
def reference(x_nhwc, w1_pt, w2_pt, bn1, bn2, groups=4, eps=1e-5):
    def gconv(x, w_pt):
        w = jnp.transpose(w_pt, (2, 3, 1, 0))       # HWIO
        return lax.conv_general_dilated(
            x, w, window_strides=(1, 1), padding="SAME",
            dimension_numbers=("NHWC", "HWIO", "NHWC"),
            feature_group_count=groups)

    def bn(y, p):
        g, b, m, v = p
        return (y - m) / jnp.sqrt(v + eps) * g + b

    silu = lambda z: z * jax.nn.sigmoid(z)
    out = silu(bn(gconv(x_nhwc, w1_pt), bn1))
    out = bn(gconv(out, w2_pt), bn2)
    out = out + x_nhwc
    return silu(out)


# ----------------------------------------------------------------------------
if __name__ == "__main__":
    N, C, H, W = 2, 8, 16, 16       # inplanes == channels == 8, groups=4
    groups = 4
    assert W * C == 128             # lane-dense layout assumption

    key = jax.random.PRNGKey(0)
    ks = jax.random.split(key, 12)
    x_nchw = jax.random.normal(ks[0], (N, C, H, W), jnp.float32)

    w1_pt = 0.1 * jax.random.normal(ks[1], (C, C // groups, 3, 3), jnp.float32)
    w2_pt = 0.1 * jax.random.normal(ks[2], (C, C // groups, 3, 3), jnp.float32)

    g1 = 1.0 + 0.1 * jax.random.normal(ks[3], (C,), jnp.float32)
    b1 = 0.1 * jax.random.normal(ks[4], (C,), jnp.float32)
    m1 = 0.1 * jax.random.normal(ks[5], (C,), jnp.float32)
    v1 = jnp.abs(1.0 + 0.1 * jax.random.normal(ks[6], (C,), jnp.float32))
    g2 = 1.0 + 0.1 * jax.random.normal(ks[7], (C,), jnp.float32)
    b2 = 0.1 * jax.random.normal(ks[8], (C,), jnp.float32)
    m2 = 0.1 * jax.random.normal(ks[9], (C,), jnp.float32)
    v2 = jnp.abs(1.0 + 0.1 * jax.random.normal(ks[10], (C,), jnp.float32))

    # NCHW (PyTorch) -> NHWC -> lane-dense (N, H, W*C)
    x_nhwc = jnp.transpose(x_nchw, (0, 2, 3, 1))
    x_lane = x_nhwc.reshape(N, H, W * C)

    w1_big = lane_conv_weight(grouped_weight_to_dense(w1_pt, groups), W)
    w2_big = lane_conv_weight(grouped_weight_to_dense(w2_pt, groups), W)
    s1, bb1 = fold_bn_lane(g1, b1, m1, v1, W)
    s2, bb2 = fold_bn_lane(g2, b2, m2, v2, W)

    # batch_tile=1 keeps 2 "parallel" grid steps (both v7x TensorCores busy);
    # for larger N, raise batch_tile to fold the batch into the matmul M dim.
    out_lane = basic_transform(x_lane, w1_big, w2_big, s1, bb1, s2, bb2,
                               C=C, batch_tile=1)
    out_lane = jax.block_until_ready(out_lane)
    out = out_lane.reshape(N, H, W, C)

    ref = reference(x_nhwc, w1_pt, w2_pt, (g1, b1, m1, v1), (g2, b2, m2, v2),
                    groups=groups)
    assert out.shape == (N, H, W, C)
    max_err = float(jnp.max(jnp.abs(out - ref)))
    assert jnp.allclose(out, ref, rtol=3e-2, atol=3e-2), max_err

    print("KERNEL_OK")
</pallas_src>

<mosaic_0001>
module attributes {stable_mosaic.version = 11 : i64} {
  func.func @basic_transform_kernel(%arg0: i32, %arg1: memref<1x16x128xf32, #tpu.memory_space<vmem>>, %arg2: memref<1152x128xbf16, #tpu.memory_space<vmem>>, %arg3: memref<1152x128xbf16, #tpu.memory_space<vmem>>, %arg4: memref<1x128xf32, #tpu.memory_space<vmem>>, %arg5: memref<1x128xf32, #tpu.memory_space<vmem>>, %arg6: memref<1x128xf32, #tpu.memory_space<vmem>>, %arg7: memref<1x128xf32, #tpu.memory_space<vmem>>, %arg8: memref<1x16x128xf32, #tpu.memory_space<vmem>>) attributes {dimension_semantics = [#tpu.dimension_semantics<parallel>], iteration_bounds = array<i64: 2>, scalar_prefetch = 0 : i64, scratch_operands = 0 : i64, tpu.core_type = #tpu.core_type<tc>, window_params = [{transform_indices = @transform_0, window_bounds = array<i64: 1, 16, 128>}, {pipeline_mode = #tpu.pipeline_mode<synchronous>, transform_indices = @transform_1, window_bounds = array<i64: 1152, 128>}, {pipeline_mode = #tpu.pipeline_mode<synchronous>, transform_indices = @transform_2, window_bounds = array<i64: 1152, 128>}, {pipeline_mode = #tpu.pipeline_mode<synchronous>, transform_indices = @transform_3, window_bounds = array<i64: 1, 128>}, {pipeline_mode = #tpu.pipeline_mode<synchronous>, transform_indices = @transform_4, window_bounds = array<i64: 1, 128>}, {pipeline_mode = #tpu.pipeline_mode<synchronous>, transform_indices = @transform_5, window_bounds = array<i64: 1, 128>}, {pipeline_mode = #tpu.pipeline_mode<synchronous>, transform_indices = @transform_6, window_bounds = array<i64: 1, 128>}, {transform_indices = @transform_7, window_bounds = array<i64: 1, 16, 128>}]} {
    %c0 = arith.constant 0 : index
    %c0_0 = arith.constant 0 : index
    %c0_1 = arith.constant 0 : index
    %0 = vector.load %arg1[%c0, %c0_0, %c0_1] : memref<1x16x128xf32, #tpu.memory_space<vmem>>, vector<1x16x128xf32>
    %cst = arith.constant 0.000000e+00 : f32
    %1 = vector.broadcast %cst : f32 to vector<1x1x128xf32>
    %2 = vector.extract_strided_slice %0 {offsets = [0, 0, 0], sizes = [1, 15, 128], strides = [1, 1, 1]} : vector<1x16x128xf32> to vector<1x15x128xf32>
    %3 = tpu.concatenate %1, %2 in 1 : vector<1x1x128xf32>, vector<1x15x128xf32> -> vector<1x16x128xf32>
    %4 = vector.extract_strided_slice %0 {offsets = [0, 1, 0], sizes = [1, 15, 128], strides = [1, 1, 1]} : vector<1x16x128xf32> to vector<1x15x128xf32>
    %5 = tpu.concatenate %4, %1 in 1 : vector<1x15x128xf32>, vector<1x1x128xf32> -> vector<1x16x128xf32>
    %cst_2 = arith.constant 0.000000e+00 : f32
    %6 = vector.broadcast %cst_2 : f32 to vector<1x16x8xf32>
    %7 = vector.extract_strided_slice %3 {offsets = [0, 0, 0], sizes = [1, 16, 120], strides = [1, 1, 1]} : vector<1x16x128xf32> to vector<1x16x120xf32>
    %8 = tpu.concatenate %6, %7 in 2 : vector<1x16x8xf32>, vector<1x16x120xf32> -> vector<1x16x128xf32>
    %9 = vector.extract_strided_slice %3 {offsets = [0, 0, 8], sizes = [1, 16, 120], strides = [1, 1, 1]} : vector<1x16x128xf32> to vector<1x16x120xf32>
    %10 = tpu.concatenate %9, %6 in 2 : vector<1x16x120xf32>, vector<1x16x8xf32> -> vector<1x16x128xf32>
    %11 = vector.extract_strided_slice %0 {offsets = [0, 0, 0], sizes = [1, 16, 120], strides = [1, 1, 1]} : vector<1x16x128xf32> to vector<1x16x120xf32>
    %12 = tpu.concatenate %6, %11 in 2 : vector<1x16x8xf32>, vector<1x16x120xf32> -> vector<1x16x128xf32>
    %13 = vector.extract_strided_slice %0 {offsets = [0, 0, 8], sizes = [1, 16, 120], strides = [1, 1, 1]} : vector<1x16x128xf32> to vector<1x16x120xf32>
    %14 = tpu.concatenate %13, %6 in 2 : vector<1x16x120xf32>, vector<1x16x8xf32> -> vector<1x16x128xf32>
    %15 = vector.extract_strided_slice %5 {offsets = [0, 0, 0], sizes = [1, 16, 120], strides = [1, 1, 1]} : vector<1x16x128xf32> to vector<1x16x120xf32>
    %16 = tpu.concatenate %6, %15 in 2 : vector<1x16x8xf32>, vector<1x16x120xf32> -> vector<1x16x128xf32>
    %17 = vector.extract_strided_slice %5 {offsets = [0, 0, 8], sizes = [1, 16, 120], strides = [1, 1, 1]} : vector<1x16x128xf32> to vector<1x16x120xf32>
    %18 = tpu.concatenate %17, %6 in 2 : vector<1x16x120xf32>, vector<1x16x8xf32> -> vector<1x16x128xf32>
    %19 = tpu.concatenate %8, %3, %10, %12, %0, %14, %16, %5, %18 in 2 : vector<1x16x128xf32>, vector<1x16x128xf32>, vector<1x16x128xf32>, vector<1x16x128xf32>, vector<1x16x128xf32>, vector<1x16x128xf32>, vector<1x16x128xf32>, vector<1x16x128xf32>, vector<1x16x128xf32> -> vector<1x16x1152xf32>
    %20 = vector.shape_cast %19 : vector<1x16x1152xf32> to vector<16x1152xf32>
    %21 = arith.truncf %20 : vector<16x1152xf32> to vector<16x1152xbf16>
    %c0_3 = arith.constant 0 : index
    %c0_4 = arith.constant 0 : index
    %22 = vector.load %arg2[%c0_3, %c0_4] : memref<1152x128xbf16, #tpu.memory_space<vmem>>, vector<1152x128xbf16>
    %cst_5 = arith.constant dense<0.000000e+00> : vector<16x128xf32>
    %23 = tpu.matmul %21, %22, %cst_5 {dimension_numbers = #tpu.dot_dimension_numbers<[1], [0], [0], [1], [0, 0, 1, 1], [], []>} : vector<16x1152xbf16>, vector<1152x128xbf16>, vector<16x128xf32> -> vector<16x128xf32>
    %c0_6 = arith.constant 0 : index
    %c0_7 = arith.constant 0 : index
    %24 = vector.load %arg4[%c0_6, %c0_7] : memref<1x128xf32, #tpu.memory_space<vmem>>, vector<1x128xf32>
    %25 = vector.broadcast %24 : vector<1x128xf32> to vector<16x128xf32>
    %26 = arith.mulf %23, %25 : vector<16x128xf32>
    %c0_8 = arith.constant 0 : index
    %c0_9 = arith.constant 0 : index
    %27 = vector.load %arg5[%c0_8, %c0_9] : memref<1x128xf32, #tpu.memory_space<vmem>>, vector<1x128xf32>
    %28 = vector.broadcast %27 : vector<1x128xf32> to vector<16x128xf32>
    %29 = arith.addf %26, %28 : vector<16x128xf32>
    %30 = arith.negf %29 : vector<16x128xf32>
    %31 = math.exp %30 : vector<16x128xf32>
    %cst_10 = arith.constant 1.000000e+00 : f32
    %32 = vector.broadcast %cst_10 : f32 to vector<16x128xf32>
    %33 = arith.addf %32, %31 : vector<16x128xf32>
    %34 = arith.divf %32, %33 : vector<16x128xf32>
    %35 = arith.mulf %29, %34 : vector<16x128xf32>
    %36 = vector.shape_cast %35 : vector<16x128xf32> to vector<1x16x128xf32>
    %cst_11 = arith.constant 0.000000e+00 : f32
    %37 = vector.broadcast %cst_11 : f32 to vector<1x1x128xf32>
    %38 = vector.extract_strided_slice %36 {offsets = [0, 0, 0], sizes = [1, 15, 128], strides = [1, 1, 1]} : vector<1x16x128xf32> to vector<1x15x128xf32>
    %39 = tpu.concatenate %37, %38 in 1 : vector<1x1x128xf32>, vector<1x15x128xf32> -> vector<1x16x128xf32>
    %40 = vector.extract_strided_slice %36 {offsets = [0, 1, 0], sizes = [1, 15, 128], strides = [1, 1, 1]} : vector<1x16x128xf32> to vector<1x15x128xf32>
    %41 = tpu.concatenate %40, %37 in 1 : vector<1x15x128xf32>, vector<1x1x128xf32> -> vector<1x16x128xf32>
    %cst_12 = arith.constant 0.000000e+00 : f32
    %42 = vector.broadcast %cst_12 : f32 to vector<1x16x8xf32>
    %43 = vector.extract_strided_slice %39 {offsets = [0, 0, 0], sizes = [1, 16, 120], strides = [1, 1, 1]} : vector<1x16x128xf32> to vector<1x16x120xf32>
    %44 = tpu.concatenate %42, %43 in 2 : vector<1x16x8xf32>, vector<1x16x120xf32> -> vector<1x16x128xf32>
    %45 = vector.extract_strided_slice %39 {offsets = [0, 0, 8], sizes = [1, 16, 120], strides = [1, 1, 1]} : vector<1x16x128xf32> to vector<1x16x120xf32>
    %46 = tpu.concatenate %45, %42 in 2 : vector<1x16x120xf32>, vector<1x16x8xf32> -> vector<1x16x128xf32>
    %47 = vector.extract_strided_slice %36 {offsets = [0, 0, 0], sizes = [1, 16, 120], strides = [1, 1, 1]} : vector<1x16x128xf32> to vector<1x16x120xf32>
    %48 = tpu.concatenate %42, %47 in 2 : vector<1x16x8xf32>, vector<1x16x120xf32> -> vector<1x16x128xf32>
    %49 = vector.extract_strided_slice %36 {offsets = [0, 0, 8], sizes = [1, 16, 120], strides = [1, 1, 1]} : vector<1x16x128xf32> to vector<1x16x120xf32>
    %50 = tpu.concatenate %49, %42 in 2 : vector<1x16x120xf32>, vector<1x16x8xf32> -> vector<1x16x128xf32>
    %51 = vector.extract_strided_slice %41 {offsets = [0, 0, 0], sizes = [1, 16, 120], strides = [1, 1, 1]} : vector<1x16x128xf32> to vector<1x16x120xf32>
    %52 = tpu.concatenate %42, %51 in 2 : vector<1x16x8xf32>, vector<1x16x120xf32> -> vector<1x16x128xf32>
    %53 = vector.extract_strided_slice %41 {offsets = [0, 0, 8], sizes = [1, 16, 120], strides = [1, 1, 1]} : vector<1x16x128xf32> to vector<1x16x120xf32>
    %54 = tpu.concatenate %53, %42 in 2 : vector<1x16x120xf32>, vector<1x16x8xf32> -> vector<1x16x128xf32>
    %55 = tpu.concatenate %44, %39, %46, %48, %36, %50, %52, %41, %54 in 2 : vector<1x16x128xf32>, vector<1x16x128xf32>, vector<1x16x128xf32>, vector<1x16x128xf32>, vector<1x16x128xf32>, vector<1x16x128xf32>, vector<1x16x128xf32>, vector<1x16x128xf32>, vector<1x16x128xf32> -> vector<1x16x1152xf32>
    %56 = vector.shape_cast %55 : vector<1x16x1152xf32> to vector<16x1152xf32>
    %57 = arith.truncf %56 : vector<16x1152xf32> to vector<16x1152xbf16>
    %c0_13 = arith.constant 0 : index
    %c0_14 = arith.constant 0 : index
    %58 = vector.load %arg3[%c0_13, %c0_14] : memref<1152x128xbf16, #tpu.memory_space<vmem>>, vector<1152x128xbf16>
    %cst_15 = arith.constant dense<0.000000e+00> : vector<16x128xf32>
    %59 = tpu.matmul %57, %58, %cst_15 {dimension_numbers = #tpu.dot_dimension_numbers<[1], [0], [0], [1], [0, 0, 1, 1], [], []>} : vector<16x1152xbf16>, vector<1152x128xbf16>, vector<16x128xf32> -> vector<16x128xf32>
    %c0_16 = arith.constant 0 : index
    %c0_17 = arith.constant 0 : index
    %60 = vector.load %arg6[%c0_16, %c0_17] : memref<1x128xf32, #tpu.memory_space<vmem>>, vector<1x128xf32>
    %61 = vector.broadcast %60 : vector<1x128xf32> to vector<16x128xf32>
    %62 = arith.mulf %59, %61 : vector<16x128xf32>
    %c0_18 = arith.constant 0 : index
    %c0_19 = arith.constant 0 : index
    %63 = vector.load %arg7[%c0_18, %c0_19] : memref<1x128xf32, #tpu.memory_space<vmem>>, vector<1x128xf32>
    %64 = vector.broadcast %63 : vector<1x128xf32> to vector<16x128xf32>
    %65 = arith.addf %62, %64 : vector<16x128xf32>
    %66 = vector.shape_cast %0 : vector<1x16x128xf32> to vector<16x128xf32>
    %67 = arith.addf %65, %66 : vector<16x128xf32>
    %68 = arith.negf %67 : vector<16x128xf32>
    %69 = math.exp %68 : vector<16x128xf32>
    %cst_20 = arith.constant 1.000000e+00 : f32
    %70 = vector.broadcast %cst_20 : f32 to vector<16x128xf32>
    %71 = arith.addf %70, %69 : vector<16x128xf32>
    %72 = arith.divf %70, %71 : vector<16x128xf32>
    %73 = arith.mulf %67, %72 : vector<16x128xf32>
    %74 = vector.shape_cast %73 : vector<16x128xf32> to vector<1x16x128xf32>
    %c0_21 = arith.constant 0 : index
    %c0_22 = arith.constant 0 : index
    %c0_23 = arith.constant 0 : index
    %75 = vector.load %arg8[%c0_21, %c0_22, %c0_23] : memref<1x16x128xf32, #tpu.memory_space<vmem>>, vector<1x16x128xf32>
    tpu.vector_store %arg8[%c0_21, %c0_22, %c0_23], %74 {strides = array<i32>} : memref<1x16x128xf32, #tpu.memory_space<vmem>>, vector<1x16x128xf32>,
    return
  }
  func.func @transform_0(%arg0: i32) -> (i32, i32, i32) {
    %c0_i32 = arith.constant 0 : i32
    %c0_i32_0 = arith.constant 0 : i32
    %c0_i32_1 = arith.constant 0 : i32
    return %arg0, %c0_i32, %c0_i32_0 : i32, i32, i32
  }
  func.func @transform_1(%arg0: i32) -> (i32, i32) {
    %c0_i32 = arith.constant 0 : i32
    %c0_i32_0 = arith.constant 0 : i32
    %c0_i32_1 = arith.constant 0 : i32
    return %c0_i32, %c0_i32_0 : i32, i32
  }
  func.func @transform_2(%arg0: i32) -> (i32, i32) {
    %c0_i32 = arith.constant 0 : i32
    %c0_i32_0 = arith.constant 0 : i32
    %c0_i32_1 = arith.constant 0 : i32
    return %c0_i32, %c0_i32_0 : i32, i32
  }
  func.func @transform_3(%arg0: i32) -> (i32, i32) {
    %c0_i32 = arith.constant 0 : i32
    %c0_i32_0 = arith.constant 0 : i32
    %c0_i32_1 = arith.constant 0 : i32
    return %c0_i32, %c0_i32_0 : i32, i32
  }
  func.func @transform_4(%arg0: i32) -> (i32, i32) {
    %c0_i32 = arith.constant 0 : i32
    %c0_i32_0 = arith.constant 0 : i32
    %c0_i32_1 = arith.constant 0 : i32
    return %c0_i32, %c0_i32_0 : i32, i32
  }
  func.func @transform_5(%arg0: i32) -> (i32, i32) {
    %c0_i32 = arith.constant 0 : i32
    %c0_i32_0 = arith.constant 0 : i32
    %c0_i32_1 = arith.constant 0 : i32
    return %c0_i32, %c0_i32_0 : i32, i32
  }
  func.func @transform_6(%arg0: i32) -> (i32, i32) {
    %c0_i32 = arith.constant 0 : i32
    %c0_i32_0 = arith.constant 0 : i32
    %c0_i32_1 = arith.constant 0 : i32
    return %c0_i32, %c0_i32_0 : i32, i32
  }
  func.func @transform_7(%arg0: i32) -> (i32, i32, i32) {
    %c0_i32 = arith.constant 0 : i32
    %c0_i32_0 = arith.constant 0 : i32
    %c0_i32_1 = arith.constant 0 : i32
    return %arg0, %c0_i32, %c0_i32_0 : i32, i32, i32
  }
}

</mosaic_0001>

<llo_original>
// kernel: tpu_custom_call.1
$region0: #{tpu_custom_call.1}
  #allocation0 [shape = 'u32[]', space=smem, size = 0x4, offset = 0x4, fixed_abs, tag = 'smem constant byte address 0x4 - core index']
  #allocation1 [shape = 'u32[72,128]{1,0:T(1,128)}', space=vmem, size = 0x9000, scoped, tag = 'internal scratch']
  %s0 = inlined_call_operand.hbm [shape: f32[2,16,128], index: 0, kind: input, shape index: {}]
  %s1 = inlined_call_operand.hbm [shape: bf16[1152,128], index: 1, kind: input, shape index: {}]
  %s2 = inlined_call_operand.hbm [shape: bf16[1152,128], index: 2, kind: input, shape index: {}]
  %s3 = inlined_call_operand.vmem [shape: f32[1,128], index: 3, kind: input, shape index: {}]
  %s4 = inlined_call_operand.vmem [shape: f32[1,128], index: 4, kind: input, shape index: {}]
  %s5 = inlined_call_operand.vmem [shape: f32[1,128], index: 5, kind: input, shape index: {}]
  %s6 = inlined_call_operand.vmem [shape: f32[1,128], index: 6, kind: input, shape index: {}]
  %s7 = inlined_call_operand.hbm [shape: f32[2,16,128], index: 7, kind: output, shape index: {}]
  %s8 = sld [smem:[#allocation0]]
  $region73: #{tpu_custom_call.1} parent=0
    _
  %s10 = ssub.s32 1, %s8
  %s11 = scalar_select 0, %s10, %s8
  $region1: #{tpu_custom_call.1} parent=0
    #allocation2 [shape = 'u8[16384]{0}', space=vmem, size = 0x4000, scoped, tag = 'input window, operand 0']
    #allocation3 [shape = 's32[2]{0}', space=sflag, size = 0x8, scoped, tag = 'scoped memory for tpu_custom_call.1']
    #allocation4 [shape = 's32[2]{0}', space=sflag, size = 0x8, scoped, tag = 'scoped memory for tpu_custom_call.1']
    #allocation5 [shape = 'u8[294912]{0}', space=vmem, size = 0x48000, scoped, tag = 'input window, operand 1, single buffered']
    #allocation6 [shape = 's32[1]{0}', space=sflag, size = 0x4, scoped, tag = 'scoped memory for tpu_custom_call.1']
    #allocation7 [shape = 'u8[294912]{0}', space=vmem, size = 0x48000, scoped, tag = 'input window, operand 2, single buffered']
    #allocation8 [shape = 'u8[16384]{0}', space=vmem, size = 0x4000, scoped, tag = 'output window, operand 0']
    %12 = vsyncpa [#allocation3], 0
    %s13 = scalar_lea.sflag [#allocation3], 1
    %14 = vsyncpa %s13, 0
    %15 = vsyncpa [#allocation6], 0
    %16 = vsyncpa [#allocation4], 0
    %s17 = scalar_lea.sflag [#allocation4], 1
    %18 = vsyncpa %s17, 0
    loop: start=0, step=1, limit=4
    $region2: #{tpu_custom_call.1} parent=1 // loop_pre_header
      _
    $region3: #{tpu_custom_call.1} parent=1 // loop_header
      %s20 = sphi 0, %s24
      %p21 = scmp.ge.s32.totalorder %s20, 4
      %s30 = sphi 0, %s32
      %s33 = sphi 0, %s30
      %s34 = sphi 0, %s33
      %s50 = sphi 0, %s34
      %s54 = sphi 0, %s54
      %s56 = sphi 0, %s54
      %s57 = sphi 0, %s56
      %s71 = sphi 0, %s57
      %s75 = sphi 0, %s75
      %s77 = sphi 0, %s75
      %s78 = sphi 0, %s77
      %s92 = sphi 0, %s78
      %s96 = sphi 0, %s96
      %s98 = sphi 0, %s96
      %s99 = sphi 0, %s98
      %s113 = sphi 0, %s99
      %s117 = sphi 0, %s117
      %s119 = sphi 0, %s117
      %s120 = sphi 0, %s119
      %s134 = sphi 0, %s120
      %s138 = sphi 0, %s138
      %s140 = sphi 0, %s138
      %s141 = sphi 0, %s140
      %s155 = sphi 0, %s141
      %s159 = sphi 0, %s159
      %s161 = sphi 0, %s159
      %s162 = sphi 0, %s161
      %s176 = sphi 0, %s162
      %s182 = sphi 0, %s184
      %s185 = sphi 0, %s182
      %s186 = sphi 0, %s185
      %s202 = sphi 0, %s186
    $region4: #{tpu_custom_call.1} parent=1 // loop_header_branch
      %23 = sbr.rel (%p21) target = $region8
    $region5: #{tpu_custom_call.1} parent=1 // loop_body
      %s25 = ssub.s32 %s20, 1
      %s26 = ssub.s32 %s20, 2
      %s27 = sadd.s32 %s20, 1
      %s28 = ssub.s32 %s20, %s27
      %p29 = scmp.eq.s32.totalorder %s28, 0
      %s31 = sadd.s32 %s30, 1
      %s32 = scalar_select %p29, %s30, %s31
      %p35 = pneg %p29
      %p36 = scmp.eq.s32.totalorder %s20, 1
      %p37 = por %p35, %p36
      %p38 = scmp.ne.s32.totalorder %s30, %s33
      %p39 = scmp.eq.s32.totalorder %s20, 0
      %p40 = por %p38, %p39
      %p41 = scmp.ne.s32.totalorder %s30, %s33
      %p42 = scmp.eq.s32.totalorder %s25, 1
      %p43 = por %p41, %p42
      %p44 = scmp.ne.s32.totalorder %s33, %s34
      %p45 = scmp.eq.s32.totalorder %s25, 0
      %p46 = por %p44, %p45
      %p47 = scmp.ne.s32.totalorder %s33, %s34
      %p48 = scmp.eq.s32.totalorder %s26, 1
      %p49 = por %p47, %p48
      %p51 = scmp.ne.s32.totalorder %s34, %s50
      %p52 = scmp.eq.s32.totalorder %s26, 0
      %p53 = por %p51, %p52
      %s55 = sadd.s32 %s54, 1
      %p58 = scmp.eq.s32.totalorder %s20, 1
      %p59 = scmp.ne.s32.totalorder %s54, %s56
      %p60 = scmp.eq.s32.totalorder %s20, 0
      %p61 = por %p59, %p60
      %p62 = scmp.ne.s32.totalorder %s54, %s56
      %p63 = scmp.eq.s32.totalorder %s25, 1
      %p64 = por %p62, %p63
      %p65 = scmp.ne.s32.totalorder %s56, %s57
      %p66 = scmp.eq.s32.totalorder %s25, 0
      %p67 = por %p65, %p66
      %p68 = scmp.ne.s32.totalorder %s56, %s57
      %p69 = scmp.eq.s32.totalorder %s26, 1
      %p70 = por %p68, %p69
      %p72 = scmp.ne.s32.totalorder %s57, %s71
      %p73 = scmp.eq.s32.totalorder %s26, 0
      %p74 = por %p72, %p73
      %s76 = sadd.s32 %s75, 1
      %p79 = scmp.eq.s32.totalorder %s20, 1
      %p80 = scmp.ne.s32.totalorder %s75, %s77
      %p81 = scmp.eq.s32.totalorder %s20, 0
      %p82 = por %p80, %p81
      %p83 = scmp.ne.s32.totalorder %s75, %s77
      %p84 = scmp.eq.s32.totalorder %s25, 1
      %p85 = por %p83, %p84
      %p86 = scmp.ne.s32.totalorder %s77, %s78
      %p87 = scmp.eq.s32.totalorder %s25, 0
      %p88 = por %p86, %p87
      %p89 = scmp.ne.s32.totalorder %s77, %s78
      %p90 = scmp.eq.s32.totalorder %s26, 1
      %p91 = por %p89, %p90
      %p93 = scmp.ne.s32.totalorder %s78, %s92
      %p94 = scmp.eq.s32.totalorder %s26, 0
      %p95 = por %p93, %p94
      %s97 = sadd.s32 %s96, 1
      %p100 = scmp.eq.s32.totalorder %s20, 1
      %p101 = scmp.ne.s32.totalorder %s96, %s98
      %p102 = scmp.eq.s32.totalorder %s20, 0
      %p103 = por %p101, %p102
      %p104 = scmp.ne.s32.totalorder %s96, %s98
      %p105 = scmp.eq.s32.totalorder %s25, 1
      %p106 = por %p104, %p105
      %p107 = scmp.ne.s32.totalorder %s98, %s99
      %p108 = scmp.eq.s32.totalorder %s25, 0
      %p109 = por %p107, %p108
      %p110 = scmp.ne.s32.totalorder %s98, %s99
      %p111 = scmp.eq.s32.totalorder %s26, 1
      %p112 = por %p110, %p111
      %p114 = scmp.ne.s32.totalorder %s99, %s113
      %p115 = scmp.eq.s32.totalorder %s26, 0
      %p116 = por %p114, %p115
      %s118 = sadd.s32 %s117, 1
      %p121 = scmp.eq.s32.totalorder %s20, 1
      %p122 = scmp.ne.s32.totalorder %s117, %s119
      %p123 = scmp.eq.s32.totalorder %s20, 0
      %p124 = por %p122, %p123
      %p125 = scmp.ne.s32.totalorder %s117, %s119
      %p126 = scmp.eq.s32.totalorder %s25, 1
      %p127 = por %p125, %p126
      %p128 = scmp.ne.s32.totalorder %s119, %s120
      %p129 = scmp.eq.s32.totalorder %s25, 0
      %p130 = por %p128, %p129
      %p131 = scmp.ne.s32.totalorder %s119, %s120
      %p132 = scmp.eq.s32.totalorder %s26, 1
      %p133 = por %p131, %p132
      %p135 = scmp.ne.s32.totalorder %s120, %s134
      %p136 = scmp.eq.s32.totalorder %s26, 0
      %p137 = por %p135, %p136
      %s139 = sadd.s32 %s138, 1
      %p142 = scmp.eq.s32.totalorder %s20, 1
      %p143 = scmp.ne.s32.totalorder %s138, %s140
      %p144 = scmp.eq.s32.totalorder %s20, 0
      %p145 = por %p143, %p144
      %p146 = scmp.ne.s32.totalorder %s138, %s140
      %p147 = scmp.eq.s32.totalorder %s25, 1
      %p148 = por %p146, %p147
      %p149 = scmp.ne.s32.totalorder %s140, %s141
      %p150 = scmp.eq.s32.totalorder %s25, 0
      %p151 = por %p149, %p150
      %p152 = scmp.ne.s32.totalorder %s140, %s141
      %p153 = scmp.eq.s32.totalorder %s26, 1
      %p154 = por %p152, %p153
      %p156 = scmp.ne.s32.totalorder %s141, %s155
      %p157 = scmp.eq.s32.totalorder %s26, 0
      %p158 = por %p156, %p157
      %s160 = sadd.s32 %s159, 1
      %p163 = scmp.eq.s32.totalorder %s20, 1
      %p164 = scmp.ne.s32.totalorder %s159, %s161
      %p165 = scmp.eq.s32.totalorder %s20, 0
      %p166 = por %p164, %p165
      %p167 = scmp.ne.s32.totalorder %s159, %s161
      %p168 = scmp.eq.s32.totalorder %s25, 1
      %p169 = por %p167, %p168
      %p170 = scmp.ne.s32.totalorder %s161, %s162
      %p171 = scmp.eq.s32.totalorder %s25, 0
      %p172 = por %p170, %p171
      %p173 = scmp.ne.s32.totalorder %s161, %s162
      %p174 = scmp.eq.s32.totalorder %s26, 1
      %p175 = por %p173, %p174
      %p177 = scmp.ne.s32.totalorder %s162, %s176
      %p178 = scmp.eq.s32.totalorder %s26, 0
      %p179 = por %p177, %p178
      %s180 = ssub.s32 %s20, %s27
      %p181 = scmp.eq.s32.totalorder %s180, 0
      %s183 = sadd.s32 %s182, 1
      %s184 = scalar_select %p181, %s182, %s183
      %p187 = pneg %p181
      %p188 = scmp.eq.s32.totalorder %s20, 1
      %p189 = por %p187, %p188
      %p190 = scmp.ne.s32.totalorder %s182, %s185
      %p191 = scmp.eq.s32.totalorder %s20, 0
      %p192 = por %p190, %p191
      %p193 = scmp.ne.s32.totalorder %s182, %s185
      %p194 = scmp.eq.s32.totalorder %s25, 1
      %p195 = por %p193, %p194
      %p196 = scmp.ne.s32.totalorder %s185, %s186
      %p197 = scmp.eq.s32.totalorder %s25, 0
      %p198 = por %p196, %p197
      %p199 = scmp.ne.s32.totalorder %s185, %s186
      %p200 = scmp.eq.s32.totalorder %s26, 1
      %p201 = por %p199, %p200
      %p203 = scmp.ne.s32.totalorder %s186, %s202
      %p204 = scmp.eq.s32.totalorder %s26, 0
      %p205 = por %p203, %p204
      %p206 = scmp.le.s32.totalorder 1, %s20
      %p207 = scmp.lt.s32.totalorder %s20, 3
      %p208 = pnand %p206, %p207
      %p209 = pneg %p208
      // Predicated region
      $region9: #{tpu_custom_call.1} parent=5 // pred_check
        _
      $region10: #{tpu_custom_call.1} parent=5 // pred_check_branch
        %211 = sbr.rel (%p208) target = $region12
      $region11: #{tpu_custom_call.1} parent=5 // pred_region
        %s212 = ssub.s32 %s20, 1
        // Predicated region
        $region13: #{tpu_custom_call.1} parent=11 // pred_check
          %p213 = pneg %p67
        $region14: #{tpu_custom_call.1} parent=11 // pred_check_branch
          %215 = sbr.rel (%p213) target = $region16
        $region15: #{tpu_custom_call.1} parent=11 // pred_region
          %217 = vsyncadd [#allocation6], 0
          %s218 = sshll.u32 %s1, 4
          %s219 = int_to_ptr.hbm [resolvable:$true] %s218
          %s220 = sshll.u32 [#allocation5], 4
          %s221 = int_to_ptr.vmem [resolvable:$true] %s220
          %226 = dma.hbm_to_vmem [thread:$0]  %s219, 9216, %s221, [#allocation6], 64, 64, 4
        $region16: #{tpu_custom_call.1} parent=11 // pred_fallthru
          _
        // Predicated region
        $region17: #{tpu_custom_call.1} parent=11 // pred_check
          %p227 = pneg %p88
        $region18: #{tpu_custom_call.1} parent=11 // pred_check_branch
          %229 = sbr.rel (%p227) target = $region20
        $region19: #{tpu_custom_call.1} parent=11 // pred_region
          %231 = vsyncadd [#allocation6], 0
          %s232 = sshll.u32 %s2, 4
          %s233 = int_to_ptr.hbm [resolvable:$true] %s232
          %s234 = sshll.u32 [#allocation7], 4
          %s235 = int_to_ptr.vmem [resolvable:$true] %s234
          %240 = dma.hbm_to_vmem [thread:$0]  %s233, 9216, %s235, [#allocation6], 64, 64, 4
        $region20: #{tpu_custom_call.1} parent=11 // pred_fallthru
          _
        // Predicated region
        $region21: #{tpu_custom_call.1} parent=11 // pred_check
          %p241 = pneg %p109
        $region22: #{tpu_custom_call.1} parent=11 // pred_check_branch
          %243 = sbr.rel (%p241) target = $region24
        $region23: #{tpu_custom_call.1} parent=11 // pred_region
          _
        $region24: #{tpu_custom_call.1} parent=11 // pred_fallthru
          _
        // Predicated region
        $region25: #{tpu_custom_call.1} parent=11 // pred_check
          %p244 = pneg %p130
        $region26: #{tpu_custom_call.1} parent=11 // pred_check_branch
          %246 = sbr.rel (%p244) target = $region28
        $region27: #{tpu_custom_call.1} parent=11 // pred_region
          _
        $region28: #{tpu_custom_call.1} parent=11 // pred_fallthru
          _
        // Predicated region
        $region29: #{tpu_custom_call.1} parent=11 // pred_check
          %p247 = pneg %p151
        $region30: #{tpu_custom_call.1} parent=11 // pred_check_branch
          %249 = sbr.rel (%p247) target = $region32
        $region31: #{tpu_custom_call.1} parent=11 // pred_region
          _
        $region32: #{tpu_custom_call.1} parent=11 // pred_fallthru
          _
        // Predicated region
        $region33: #{tpu_custom_call.1} parent=11 // pred_check
          %p250 = pneg %p172
        $region34: #{tpu_custom_call.1} parent=11 // pred_check_branch
          %252 = sbr.rel (%p250) target = $region36
        $region35: #{tpu_custom_call.1} parent=11 // pred_region
          _
        $region36: #{tpu_custom_call.1} parent=11 // pred_fallthru
          _
      $region12: #{tpu_custom_call.1} parent=5 // pred_fallthru
        _
      %p253 = scmp.lt.s32.totalorder %s20, 2
      // Predicated region
      $region37: #{tpu_custom_call.1} parent=5 // pred_check
        %p254 = pneg %p253
      $region38: #{tpu_custom_call.1} parent=5 // pred_check_branch
        %256 = sbr.rel (%p254) target = $region40
      $region39: #{tpu_custom_call.1} parent=5 // pred_region
        // Predicated region
        $region41: #{tpu_custom_call.1} parent=39 // pred_check
          %p257 = pneg %p40
        $region42: #{tpu_custom_call.1} parent=39 // pred_check_branch
          %259 = sbr.rel (%p257) target = $region44
        $region43: #{tpu_custom_call.1} parent=39 // pred_region
          %s260 = sand.u32 %s30, 1
          %s261 = scalar_lea.sflag [#allocation3], %s260
          %s262 = sand.u32 %s30, 1
          %s263 = smul.addr %s262, 16
          %s264 = scalar_lea.vmem [#allocation2], %s263
          %266 = vsyncadd %s261, 0
          %s267 = smul.addr %s20, 2
          %s268 = smul.addr %s267, 8
          %s269 = scalar_lea.hbm %s0, %s268
          %s270 = sshll.u32 %s269, 4
          %s271 = int_to_ptr.hbm [resolvable:$true] %s270
          %s272 = sshll.u32 %s264, 4
          %s273 = int_to_ptr.vmem [resolvable:$true] %s272
          %278 = dma.hbm_to_vmem [thread:$0]  %s271, 256, %s273, %s261, 128, 128, 8
        $region44: #{tpu_custom_call.1} parent=39 // pred_fallthru
          _
      $region40: #{tpu_custom_call.1} parent=5 // pred_fallthru
        _
      %p279 = scmp.le.s32.totalorder 1, %s20
      %p280 = scmp.lt.s32.totalorder %s20, 3
      %p281 = pnand %p279, %p280
      %p282 = pneg %p281
      // Predicated region
      $region45: #{tpu_custom_call.1} parent=5 // pred_check
        _
      $region46: #{tpu_custom_call.1} parent=5 // pred_check_branch
        %284 = sbr.rel (%p281) target = $region48
      $region47: #{tpu_custom_call.1} parent=5 // pred_region
        %s285 = ssub.s32 %s20, 1
        %s286 = sand.u32 %s33, 1
        %s287 = scalar_lea.sflag [#allocation3], %s286
        %s288 = sand.u32 %s33, 1
        %s289 = smul.addr %s288, 16
        %s290 = scalar_lea.vmem [#allocation2], %s289
        // Predicated region
        $region49: #{tpu_custom_call.1} parent=47 // pred_check
          %p291 = pneg %p46
        $region50: #{tpu_custom_call.1} parent=47 // pred_check_branch
          %293 = sbr.rel (%p291) target = $region52
        $region51: #{tpu_custom_call.1} parent=47 // pred_region
          %295 = dma.done %s287, 256
        $region52: #{tpu_custom_call.1} parent=47 // pred_fallthru
          _
        // Predicated region
        $region53: #{tpu_custom_call.1} parent=47 // pred_check
          %p296 = pneg %p67
        $region54: #{tpu_custom_call.1} parent=47 // pred_check_branch
          %298 = sbr.rel (%p296) target = $region56
        $region55: #{tpu_custom_call.1} parent=47 // pred_region
          %300 = dma.done [#allocation6], 9216
        $region56: #{tpu_custom_call.1} parent=47 // pred_fallthru
          _
        // Predicated region
        $region57: #{tpu_custom_call.1} parent=47 // pred_check
          %p301 = pneg %p88
        $region58: #{tpu_custom_call.1} parent=47 // pred_check_branch
          %303 = sbr.rel (%p301) target = $region60
        $region59: #{tpu_custom_call.1} parent=47 // pred_region
          %305 = dma.done [#allocation6], 9216
        $region60: #{tpu_custom_call.1} parent=47 // pred_fallthru
          _
        %s306 = sand.u32 %s33, 1
        %s307 = scalar_lea.sflag [#allocation3], %s306
        %s308 = sand.u32 %s33, 1
        %s309 = smul.addr %s308, 16
        %s310 = scalar_lea.vmem [#allocation2], %s309
        %p311 = pneg %p46
        %p312 = pneg %p43
        %p313 = pneg %p67
        %p314 = pneg %p64
        %p315 = pneg %p88
        %p316 = pneg %p85
        %p317 = pneg %p109
        %p318 = pneg %p106
        %p319 = pneg %p130
        %p320 = pneg %p127
        %p321 = pneg %p151
        %p322 = pneg %p148
        %p323 = pneg %p172
        %p324 = pneg %p169
        %p325 = pneg %p198
        %p326 = pneg %p195
        %s327 = sand.u32 %s185, 1
        %s328 = scalar_lea.sflag [#allocation4], %s327
        %s329 = sand.u32 %s185, 1
        %s330 = smul.addr %s329, 16
        %s331 = scalar_lea.vmem [#allocation8], %s330
        %v332 = vld [vmem:[%s290] sm:$0xff]
        %v333 = vld [vmem:[%s290 + $0x8] sm:$0xff]
        %vm336 = vcmask 1040384
        %v337 = vrot.slane %v332, 7
        %v338 = vrot.slane %v333, 7
        %v339 = vsel %vm336, %v337, %v338
        %v342 = vsel %vm336, 0.0, %v337
        %vm343 = vcmask 1046528
        %v344 = vrot.slane %v332, 1
        %v345 = vrot.slane %v333, 1
        %v346 = vsel %vm343, %v344, %v345
        %v349 = vsel %vm343, %v345, 0.0
        %351 = vrot.lane.b32.xlu0 %v342, 8
        %v352 = vpop.permute.xlu0 %351
        %353 = vrot.lane.b32.xlu0 %v339, 8
        %v354 = vpop.permute.xlu0 %353
        %vm357 = vcmask 64512
        %v358 = vsel %vm357, 0.0, %v352
        %v359 = vsel %vm357, 0.0, %v354
        %360 = vrot.lane.b32.xlu0 %v342, 120
        %v361 = vpop.permute.xlu0 %360
        %362 = vrot.lane.b32.xlu0 %v339, 120
        %v363 = vpop.permute.xlu0 %362
        %vm366 = vcmask 982016
        %v367 = vsel %vm366, %v361, 0.0
        %v368 = vsel %vm366, %v363, 0.0
        %369 = vrot.lane.b32.xlu0 %v332, 8
        %v370 = vpop.permute.xlu0 %369
        %371 = vrot.lane.b32.xlu0 %v333, 8
        %v372 = vpop.permute.xlu0 %371
        %v375 = vsel %vm357, 0.0, %v370
        %v376 = vsel %vm357, 0.0, %v372
        %377 = vrot.lane.b32.xlu0 %v332, 120
        %v378 = vpop.permute.xlu0 %377
        %379 = vrot.lane.b32.xlu0 %v333, 120
        %v380 = vpop.permute.xlu0 %379
        %v383 = vsel %vm366, %v378, 0.0
        %v384 = vsel %vm366, %v380, 0.0
        %386 = vrot.lane.b32.xlu0 %v346, 8
        %v387 = vpop.permute.xlu0 %386
        %388 = vrot.lane.b32.xlu0 %v349, 8
        %v389 = vpop.permute.xlu0 %388
        %v392 = vsel %vm357, 0.0, %v387
        %v393 = vsel %vm357, 0.0, %v389
        %394 = vrot.lane.b32.xlu0 %v346, 120
        %v395 = vpop.permute.xlu0 %394
        %396 = vrot.lane.b32.xlu0 %v349, 120
        %v397 = vpop.permute.xlu0 %396
        %v400 = vsel %vm366, %v395, 0.0
        %v401 = vsel %vm366, %v397, 0.0
        %v402 = vpack.c.bf16 %v359, %v358
        %v403 = vpack.c.bf16 %v339, %v342
        %v404 = vpack.c.bf16 %v368, %v367
        %v405 = vpack.c.bf16 %v376, %v375
        %v406 = vpack.c.bf16 %v333, %v332
        %v407 = vpack.c.bf16 %v384, %v383
        %v408 = vpack.c.bf16 %v393, %v392
        %v409 = vpack.c.bf16 %v349, %v346
        %v410 = vpack.c.bf16 %v401, %v400
        %v411 = vld [vmem:[#allocation5] sm:$0xf]
        %v412 = vld [vmem:[#allocation5 + $0x4] sm:$0xf]
        %v413 = vld [vmem:[#allocation5 + $0x8] sm:$0xf]
        %v414 = vld [vmem:[#allocation5 + $0xc] sm:$0xf]
        %v415 = vld [vmem:[#allocation5 + $0x10] sm:$0xf]
        %v416 = vld [vmem:[#allocation5 + $0x14] sm:$0xf]
        %v417 = vld [vmem:[#allocation5 + $0x18] sm:$0xf]
        %v418 = vld [vmem:[#allocation5 + $0x1c] sm:$0xf]
        %v419 = vld [vmem:[#allocation5 + $0x20] sm:$0xf]
        %v420 = vld [vmem:[#allocation5 + $0x24] sm:$0xf]
        %v421 = vld [vmem:[#allocation5 + $0x28] sm:$0xf]
        %v422 = vld [vmem:[#allocation5 + $0x2c] sm:$0xf]
        %v423 = vld [vmem:[#allocation5 + $0x30] sm:$0xf]
        %v424 = vld [vmem:[#allocation5 + $0x34] sm:$0xf]
        %v425 = vld [vmem:[#allocation5 + $0x38] sm:$0xf]
        %v426 = vld [vmem:[#allocation5 + $0x3c] sm:$0xf]
        %v427 = vld [vmem:[#allocation5 + $0x40] sm:$0xf]
        %v428 = vld [vmem:[#allocation5 + $0x44] sm:$0xf]
        %v429 = vld [vmem:[#allocation5 + $0x48] sm:$0xf]
        %v430 = vld [vmem:[#allocation5 + $0x4c] sm:$0xf]
        %v431 = vld [vmem:[#allocation5 + $0x50] sm:$0xf]
        %v432 = vld [vmem:[#allocation5 + $0x54] sm:$0xf]
        %v433 = vld [vmem:[#allocation5 + $0x58] sm:$0xf]
        %v434 = vld [vmem:[#allocation5 + $0x5c] sm:$0xf]
        %v435 = vld [vmem:[#allocation5 + $0x60] sm:$0xf]
        %v436 = vld [vmem:[#allocation5 + $0x64] sm:$0xf]
        %v437 = vld [vmem:[#allocation5 + $0x68] sm:$0xf]
        %v438 = vld [vmem:[#allocation5 + $0x6c] sm:$0xf]
        %v439 = vld [vmem:[#allocation5 + $0x70] sm:$0xf]
        %v440 = vld [vmem:[#allocation5 + $0x74] sm:$0xf]
        %v441 = vld [vmem:[#allocation5 + $0x78] sm:$0xf]
        %v442 = vld [vmem:[#allocation5 + $0x7c] sm:$0xf]
        %v443 = vld [vmem:[#allocation5 + $0x80] sm:$0xf]
        %v444 = vld [vmem:[#allocation5 + $0x84] sm:$0xf]
        %v445 = vld [vmem:[#allocation5 + $0x88] sm:$0xf]
        %v446 = vld [vmem:[#allocation5 + $0x8c] sm:$0xf]
        %v447 = vld [vmem:[#allocation5 + $0x90] sm:$0xf]
        %v448 = vld [vmem:[#allocation5 + $0x94] sm:$0xf]
        %v449 = vld [vmem:[#allocation5 + $0x98] sm:$0xf]
        %v450 = vld [vmem:[#allocation5 + $0x9c] sm:$0xf]
        %v451 = vld [vmem:[#allocation5 + $0xa0] sm:$0xf]
        %v452 = vld [vmem:[#allocation5 + $0xa4] sm:$0xf]
        %v453 = vld [vmem:[#allocation5 + $0xa8] sm:$0xf]
        %v454 = vld [vmem:[#allocation5 + $0xac] sm:$0xf]
        %v455 = vld [vmem:[#allocation5 + $0xb0] sm:$0xf]
        %v456 = vld [vmem:[#allocation5 + $0xb4] sm:$0xf]
        %v457 = vld [vmem:[#allocation5 + $0xb8] sm:$0xf]
        %v458 = vld [vmem:[#allocation5 + $0xbc] sm:$0xf]
        %v459 = vld [vmem:[#allocation5 + $0xc0] sm:$0xf]
        %v460 = vld [vmem:[#allocation5 + $0xc4] sm:$0xf]
        %v461 = vld [vmem:[#allocation5 + $0xc8] sm:$0xf]
        %v462 = vld [vmem:[#allocation5 + $0xcc] sm:$0xf]
        %v463 = vld [vmem:[#allocation5 + $0xd0] sm:$0xf]
        %v464 = vld [vmem:[#allocation5 + $0xd4] sm:$0xf]
        %v465 = vld [vmem:[#allocation5 + $0xd8] sm:$0xf]
        %v466 = vld [vmem:[#allocation5 + $0xdc] sm:$0xf]
        %v467 = vld [vmem:[#allocation5 + $0xe0] sm:$0xf]
        %v468 = vld [vmem:[#allocation5 + $0xe4] sm:$0xf]
        %v469 = vld [vmem:[#allocation5 + $0xe8] sm:$0xf]
        %v470 = vld [vmem:[#allocation5 + $0xec] sm:$0xf]
        %v471 = vld [vmem:[#allocation5 + $0xf0] sm:$0xf]
        %v472 = vld [vmem:[#allocation5 + $0xf4] sm:$0xf]
        %v473 = vld [vmem:[#allocation5 + $0xf8] sm:$0xf]
        %v474 = vld [vmem:[#allocation5 + $0xfc] sm:$0xf]
        %v475 = vld [vmem:[#allocation5 + $0x100] sm:$0xf]
        %v476 = vld [vmem:[#allocation5 + $0x104] sm:$0xf]
        %v477 = vld [vmem:[#allocation5 + $0x108] sm:$0xf]
        %v478 = vld [vmem:[#allocation5 + $0x10c] sm:$0xf]
        %v479 = vld [vmem:[#allocation5 + $0x110] sm:$0xf]
        %v480 = vld [vmem:[#allocation5 + $0x114] sm:$0xf]
        %v481 = vld [vmem:[#allocation5 + $0x118] sm:$0xf]
        %v482 = vld [vmem:[#allocation5 + $0x11c] sm:$0xf]
        %v483 = vld [vmem:[#allocation5 + $0x120] sm:$0xf]
        %v484 = vld [vmem:[#allocation5 + $0x124] sm:$0xf]
        %v485 = vld [vmem:[#allocation5 + $0x128] sm:$0xf]
        %v486 = vld [vmem:[#allocation5 + $0x12c] sm:$0xf]
        %v487 = vld [vmem:[#allocation5 + $0x130] sm:$0xf]
        %v488 = vld [vmem:[#allocation5 + $0x134] sm:$0xf]
        %v489 = vld [vmem:[#allocation5 + $0x138] sm:$0xf]
        %v490 = vld [vmem:[#allocation5 + $0x13c] sm:$0xf]
        %v491 = vld [vmem:[#allocation5 + $0x140] sm:$0xf]
        %v492 = vld [vmem:[#allocation5 + $0x144] sm:$0xf]
        %v493 = vld [vmem:[#allocation5 + $0x148] sm:$0xf]
        %v494 = vld [vmem:[#allocation5 + $0x14c] sm:$0xf]
        %v495 = vld [vmem:[#allocation5 + $0x150] sm:$0xf]
        %v496 = vld [vmem:[#allocation5 + $0x154] sm:$0xf]
        %v497 = vld [vmem:[#allocation5 + $0x158] sm:$0xf]
        %v498 = vld [vmem:[#allocation5 + $0x15c] sm:$0xf]
        %v499 = vld [vmem:[#allocation5 + $0x160] sm:$0xf]
        %v500 = vld [vmem:[#allocation5 + $0x164] sm:$0xf]
        %v501 = vld [vmem:[#allocation5 + $0x168] sm:$0xf]
        %v502 = vld [vmem:[#allocation5 + $0x16c] sm:$0xf]
        %v503 = vld [vmem:[#allocation5 + $0x170] sm:$0xf]
        %v504 = vld [vmem:[#allocation5 + $0x174] sm:$0xf]
        %v505 = vld [vmem:[#allocation5 + $0x178] sm:$0xf]
        %v506 = vld [vmem:[#allocation5 + $0x17c] sm:$0xf]
        %v507 = vld [vmem:[#allocation5 + $0x180] sm:$0xf]
        %v508 = vld [vmem:[#allocation5 + $0x184] sm:$0xf]
        %v509 = vld [vmem:[#allocation5 + $0x188] sm:$0xf]
        %v510 = vld [vmem:[#allocation5 + $0x18c] sm:$0xf]
        %v511 = vld [vmem:[#allocation5 + $0x190] sm:$0xf]
        %v512 = vld [vmem:[#allocation5 + $0x194] sm:$0xf]
        %v513 = vld [vmem:[#allocation5 + $0x198] sm:$0xf]
        %v514 = vld [vmem:[#allocation5 + $0x19c] sm:$0xf]
        %v515 = vld [vmem:[#allocation5 + $0x1a0] sm:$0xf]
        %v516 = vld [vmem:[#allocation5 + $0x1a4] sm:$0xf]
        %v517 = vld [vmem:[#allocation5 + $0x1a8] sm:$0xf]
        %v518 = vld [vmem:[#allocation5 + $0x1ac] sm:$0xf]
        %v519 = vld [vmem:[#allocation5 + $0x1b0] sm:$0xf]
        %v520 = vld [vmem:[#allocation5 + $0x1b4] sm:$0xf]
        %v521 = vld [vmem:[#allocation5 + $0x1b8] sm:$0xf]
        %v522 = vld [vmem:[#allocation5 + $0x1bc] sm:$0xf]
        %v523 = vld [vmem:[#allocation5 + $0x1c0] sm:$0xf]
        %v524 = vld [vmem:[#allocation5 + $0x1c4] sm:$0xf]
        %v525 = vld [vmem:[#allocation5 + $0x1c8] sm:$0xf]
        %v526 = vld [vmem:[#allocation5 + $0x1cc] sm:$0xf]
        %v527 = vld [vmem:[#allocation5 + $0x1d0] sm:$0xf]
        %v528 = vld [vmem:[#allocation5 + $0x1d4] sm:$0xf]
        %v529 = vld [vmem:[#allocation5 + $0x1d8] sm:$0xf]
        %v530 = vld [vmem:[#allocation5 + $0x1dc] sm:$0xf]
        %v531 = vld [vmem:[#allocation5 + $0x1e0] sm:$0xf]
        %v532 = vld [vmem:[#allocation5 + $0x1e4] sm:$0xf]
        %v533 = vld [vmem:[#allocation5 + $0x1e8] sm:$0xf]
        %v534 = vld [vmem:[#allocation5 + $0x1ec] sm:$0xf]
        %v535 = vld [vmem:[#allocation5 + $0x1f0] sm:$0xf]
        %v536 = vld [vmem:[#allocation5 + $0x1f4] sm:$0xf]
        %v537 = vld [vmem:[#allocation5 + $0x1f8] sm:$0xf]
        %v538 = vld [vmem:[#allocation5 + $0x1fc] sm:$0xf]
        %v539 = vld [vmem:[#allocation5 + $0x200] sm:$0xf]
        %v540 = vld [vmem:[#allocation5 + $0x204] sm:$0xf]
        %v541 = vld [vmem:[#allocation5 + $0x208] sm:$0xf]
        %v542 = vld [vmem:[#allocation5 + $0x20c] sm:$0xf]
        %v543 = vld [vmem:[#allocation5 + $0x210] sm:$0xf]
        %v544 = vld [vmem:[#allocation5 + $0x214] sm:$0xf]
        %v545 = vld [vmem:[#allocation5 + $0x218] sm:$0xf]
        %v546 = vld [vmem:[#allocation5 + $0x21c] sm:$0xf]
        %v547 = vld [vmem:[#allocation5 + $0x220] sm:$0xf]
        %v548 = vld [vmem:[#allocation5 + $0x224] sm:$0xf]
        %v549 = vld [vmem:[#allocation5 + $0x228] sm:$0xf]
        %v550 = vld [vmem:[#allocation5 + $0x22c] sm:$0xf]
        %v551 = vld [vmem:[#allocation5 + $0x230] sm:$0xf]
        %v552 = vld [vmem:[#allocation5 + $0x234] sm:$0xf]
        %v553 = vld [vmem:[#allocation5 + $0x238] sm:$0xf]
        %v554 = vld [vmem:[#allocation5 + $0x23c] sm:$0xf]
        %v699 = vunpack.c.l.b16 %v411
        %v700 = vunpack.c.l.b16 %v412
        %v701 = vunpack.c.l.b16 %v413
        %v702 = vunpack.c.l.b16 %v414
        %v703 = vunpack.c.l.b16 %v415
        %v704 = vunpack.c.l.b16 %v416
        %v705 = vunpack.c.l.b16 %v417
        %v706 = vunpack.c.l.b16 %v418
        %v707 = vunpack.c.l.b16 %v419
        %v708 = vunpack.c.l.b16 %v420
        %v709 = vunpack.c.l.b16 %v421
        %v710 = vunpack.c.l.b16 %v422
        %v711 = vunpack.c.l.b16 %v423
        %v712 = vunpack.c.l.b16 %v424
        %v713 = vunpack.c.l.b16 %v425
        %v714 = vunpack.c.l.b16 %v426
        %v715 = vunpack.c.l.b16 %v427
        %v716 = vunpack.c.l.b16 %v428
        %v717 = vunpack.c.l.b16 %v429
        %v718 = vunpack.c.l.b16 %v430
        %v719 = vunpack.c.l.b16 %v431
        %v720 = vunpack.c.l.b16 %v432
        %v721 = vunpack.c.l.b16 %v433
        %v722 = vunpack.c.l.b16 %v434
        %v723 = vunpack.c.l.b16 %v435
        %v724 = vunpack.c.l.b16 %v436
        %v725 = vunpack.c.l.b16 %v437
        %v726 = vunpack.c.l.b16 %v438
        %v727 = vunpack.c.l.b16 %v439
        %v728 = vunpack.c.l.b16 %v440
        %v729 = vunpack.c.l.b16 %v441
        %v730 = vunpack.c.l.b16 %v442
        %v731 = vunpack.c.l.b16 %v443
        %v732 = vunpack.c.l.b16 %v444
        %v733 = vunpack.c.l.b16 %v445
        %v734 = vunpack.c.l.b16 %v446
        %v735 = vunpack.c.l.b16 %v447
        %v736 = vunpack.c.l.b16 %v448
        %v737 = vunpack.c.l.b16 %v449
        %v738 = vunpack.c.l.b16 %v450
        %v739 = vunpack.c.l.b16 %v451
        %v740 = vunpack.c.l.b16 %v452
        %v741 = vunpack.c.l.b16 %v453
        %v742 = vunpack.c.l.b16 %v454
        %v743 = vunpack.c.l.b16 %v455
        %v744 = vunpack.c.l.b16 %v456
        %v745 = vunpack.c.l.b16 %v457
        %v746 = vunpack.c.l.b16 %v458
        %v747 = vunpack.c.l.b16 %v459
        %v748 = vunpack.c.l.b16 %v460
        %v749 = vunpack.c.l.b16 %v461
        %v750 = vunpack.c.l.b16 %v462
        %v751 = vunpack.c.l.b16 %v463
        %v752 = vunpack.c.l.b16 %v464
        %v753 = vunpack.c.l.b16 %v465
        %v754 = vunpack.c.l.b16 %v466
        %v755 = vunpack.c.l.b16 %v467
        %v756 = vunpack.c.l.b16 %v468
        %v757 = vunpack.c.l.b16 %v469
        %v758 = vunpack.c.l.b16 %v470
        %v759 = vunpack.c.l.b16 %v471
        %v760 = vunpack.c.l.b16 %v472
        %v761 = vunpack.c.l.b16 %v473
        %v762 = vunpack.c.l.b16 %v474
        %v763 = vunpack.c.l.b16 %v475
        %v764 = vunpack.c.l.b16 %v476
        %v765 = vunpack.c.l.b16 %v477
        %v766 = vunpack.c.l.b16 %v478
        %v767 = vunpack.c.l.b16 %v479
        %v768 = vunpack.c.l.b16 %v480
        %v769 = vunpack.c.l.b16 %v481
        %v770 = vunpack.c.l.b16 %v482
        %v771 = vunpack.c.l.b16 %v483
        %v772 = vunpack.c.l.b16 %v484
        %v773 = vunpack.c.l.b16 %v485
        %v774 = vunpack.c.l.b16 %v486
        %v775 = vunpack.c.l.b16 %v487
        %v776 = vunpack.c.l.b16 %v488
        %v777 = vunpack.c.l.b16 %v489
        %v778 = vunpack.c.l.b16 %v490
        %v779 = vunpack.c.l.b16 %v491
        %v780 = vunpack.c.l.b16 %v492
        %v781 = vunpack.c.l.b16 %v493
        %v782 = vunpack.c.l.b16 %v494
        %v783 = vunpack.c.l.b16 %v495
        %v784 = vunpack.c.l.b16 %v496
        %v785 = vunpack.c.l.b16 %v497
        %v786 = vunpack.c.l.b16 %v498
        %v787 = vunpack.c.l.b16 %v499
        %v788 = vunpack.c.l.b16 %v500
        %v789 = vunpack.c.l.b16 %v501
        %v790 = vunpack.c.l.b16 %v502
        %v791 = vunpack.c.l.b16 %v503
        %v792 = vunpack.c.l.b16 %v504
        %v793 = vunpack.c.l.b16 %v505
        %v794 = vunpack.c.l.b16 %v506
        %v795 = vunpack.c.l.b16 %v507
        %v796 = vunpack.c.l.b16 %v508
        %v797 = vunpack.c.l.b16 %v509
        %v798 = vunpack.c.l.b16 %v510
        %v799 = vunpack.c.l.b16 %v511
        %v800 = vunpack.c.l.b16 %v512
        %v801 = vunpack.c.l.b16 %v513
        %v802 = vunpack.c.l.b16 %v514
        %v803 = vunpack.c.l.b16 %v515
        %v804 = vunpack.c.l.b16 %v516
        %v805 = vunpack.c.l.b16 %v517
        %v806 = vunpack.c.l.b16 %v518
        %v807 = vunpack.c.l.b16 %v519
        %v808 = vunpack.c.l.b16 %v520
        %v809 = vunpack.c.l.b16 %v521
        %v810 = vunpack.c.l.b16 %v522
        %v811 = vunpack.c.l.b16 %v523
        %v812 = vunpack.c.l.b16 %v524
        %v813 = vunpack.c.l.b16 %v525
        %v814 = vunpack.c.l.b16 %v526
        %v815 = vunpack.c.l.b16 %v527
        %v816 = vunpack.c.l.b16 %v528
        %v817 = vunpack.c.l.b16 %v529
        %v818 = vunpack.c.l.b16 %v530
        %v819 = vunpack.c.l.b16 %v531
        %v820 = vunpack.c.l.b16 %v532
        %v821 = vunpack.c.l.b16 %v533
        %v822 = vunpack.c.l.b16 %v534
        %v823 = vunpack.c.l.b16 %v535
        %v824 = vunpack.c.l.b16 %v536
        %v825 = vunpack.c.l.b16 %v537
        %v826 = vunpack.c.l.b16 %v538
        %v827 = vunpack.c.l.b16 %v539
        %v828 = vunpack.c.l.b16 %v540
        %v829 = vunpack.c.l.b16 %v541
        %v830 = vunpack.c.l.b16 %v542
        %v831 = vunpack.c.l.b16 %v543
        %v832 = vunpack.c.l.b16 %v544
        %v833 = vunpack.c.l.b16 %v545
        %v834 = vunpack.c.l.b16 %v546
        %v835 = vunpack.c.l.b16 %v547
        %v836 = vunpack.c.l.b16 %v548
        %v837 = vunpack.c.l.b16 %v549
        %v838 = vunpack.c.l.b16 %v550
        %v839 = vunpack.c.l.b16 %v551
        %v840 = vunpack.c.l.b16 %v552
        %v841 = vunpack.c.l.b16 %v553
        %v842 = vunpack.c.l.b16 %v554
        %v843 = vpack.c.b16 %v700, %v699
        %v844 = vpack.c.b16 %v702, %v701
        %v845 = vpack.c.b16 %v704, %v703
        %v846 = vpack.c.b16 %v706, %v705
        %v847 = vpack.c.b16 %v708, %v707
        %v848 = vpack.c.b16 %v710, %v709
        %v849 = vpack.c.b16 %v712, %v711
        %v850 = vpack.c.b16 %v714, %v713
        %v851 = vpack.c.b16 %v716, %v715
        %v852 = vpack.c.b16 %v718, %v717
        %v853 = vpack.c.b16 %v720, %v719
        %v854 = vpack.c.b16 %v722, %v721
        %v855 = vpack.c.b16 %v724, %v723
        %v856 = vpack.c.b16 %v726, %v725
        %v857 = vpack.c.b16 %v728, %v727
        %v858 = vpack.c.b16 %v730, %v729
        %v859 = vpack.c.b16 %v732, %v731
        %v860 = vpack.c.b16 %v734, %v733
        %v861 = vpack.c.b16 %v736, %v735
        %v862 = vpack.c.b16 %v738, %v737
        %v863 = vpack.c.b16 %v740, %v739
        %v864 = vpack.c.b16 %v742, %v741
        %v865 = vpack.c.b16 %v744, %v743
        %v866 = vpack.c.b16 %v746, %v745
        %v867 = vpack.c.b16 %v748, %v747
        %v868 = vpack.c.b16 %v750, %v749
        %v869 = vpack.c.b16 %v752, %v751
        %v870 = vpack.c.b16 %v754, %v753
        %v871 = vpack.c.b16 %v756, %v755
        %v872 = vpack.c.b16 %v758, %v757
        %v873 = vpack.c.b16 %v760, %v759
        %v874 = vpack.c.b16 %v762, %v761
        %v875 = vpack.c.b16 %v764, %v763
        %v876 = vpack.c.b16 %v766, %v765
        %v877 = vpack.c.b16 %v768, %v767
        %v878 = vpack.c.b16 %v770, %v769
        %v879 = vpack.c.b16 %v772, %v771
        %v880 = vpack.c.b16 %v774, %v773
        %v881 = vpack.c.b16 %v776, %v775
        %v882 = vpack.c.b16 %v778, %v777
        %v883 = vpack.c.b16 %v780, %v779
        %v884 = vpack.c.b16 %v782, %v781
        %v885 = vpack.c.b16 %v784, %v783
        %v886 = vpack.c.b16 %v786, %v785
        %v887 = vpack.c.b16 %v788, %v787
        %v888 = vpack.c.b16 %v790, %v789
        %v889 = vpack.c.b16 %v792, %v791
        %v890 = vpack.c.b16 %v794, %v793
        %v891 = vpack.c.b16 %v796, %v795
        %v892 = vpack.c.b16 %v798, %v797
        %v893 = vpack.c.b16 %v800, %v799
        %v894 = vpack.c.b16 %v802, %v801
        %v895 = vpack.c.b16 %v804, %v803
        %v896 = vpack.c.b16 %v806, %v805
        %v897 = vpack.c.b16 %v808, %v807
        %v898 = vpack.c.b16 %v810, %v809
        %v899 = vpack.c.b16 %v812, %v811
        %v900 = vpack.c.b16 %v814, %v813
        %v901 = vpack.c.b16 %v816, %v815
        %v902 = vpack.c.b16 %v818, %v817
        %v903 = vpack.c.b16 %v820, %v819
        %v904 = vpack.c.b16 %v822, %v821
        %v905 = vpack.c.b16 %v824, %v823
        %v906 = vpack.c.b16 %v826, %v825
        %v907 = vpack.c.b16 %v828, %v827
        %v908 = vpack.c.b16 %v830, %v829
        %v909 = vpack.c.b16 %v832, %v831
        %v910 = vpack.c.b16 %v834, %v833
        %v911 = vpack.c.b16 %v836, %v835
        %v912 = vpack.c.b16 %v838, %v837
        %v913 = vpack.c.b16 %v840, %v839
        %v914 = vpack.c.b16 %v842, %v841
        %987 = vmatpush.bf16.msra.mxu0 %v850
        %988 = vmatpush.bf16.msra.mxu0 %v849
        %989 = vmatpush.bf16.msra.mxu0 %v848
        %990 = vmatpush.bf16.msra.mxu0 %v847
        %991 = vmatpush.bf16.msra.mxu0 %v846
        %992 = vmatpush.bf16.msra.mxu0 %v845
        %993 = vmatpush.bf16.msra.mxu0 %v844
        %994 = vmatpush.bf16.msra.mxu0 %v843
        %995 = vmatmul.bf16.gmra.mxu0 %v402
        %v996 = vpop.f32.mrf.mxu0
        %v997 = vadd.f32 0.0, %v996
        %v998 = vpop.f32.mrf.mxu0
        %v999 = vadd.f32 0.0, %v998
        %1000 = vdwg.mxu0
        %1001 = vmatpush.bf16.msra.mxu0 %v858
        %1002 = vmatpush.bf16.msra.mxu0 %v857
        %1003 = vmatpush.bf16.msra.mxu0 %v856
        %1004 = vmatpush.bf16.msra.mxu0 %v855
        %1005 = vmatpush.bf16.msra.mxu0 %v854
        %1006 = vmatpush.bf16.msra.mxu0 %v853
        %1007 = vmatpush.bf16.msra.mxu0 %v852
        %1008 = vmatpush.bf16.msra.mxu0 %v851
        %1009 = vmatmul.bf16.gmra.mxu0 %v403
        %v1010 = vpop.f32.mrf.mxu0
        %v1011 = vadd.f32 %v997, %v1010
        %v1012 = vpop.f32.mrf.mxu0
        %v1013 = vadd.f32 %v999, %v1012
        %1014 = vdwg.mxu0
        %1015 = vmatpush.bf16.msra.mxu0 %v866
        %1016 = vmatpush.bf16.msra.mxu0 %v865
        %1017 = vmatpush.bf16.msra.mxu0 %v864
        %1018 = vmatpush.bf16.msra.mxu0 %v863
        %1019 = vmatpush.bf16.msra.mxu0 %v862
        %1020 = vmatpush.bf16.msra.mxu0 %v861
        %1021 = vmatpush.bf16.msra.mxu0 %v860
        %1022 = vmatpush.bf16.msra.mxu0 %v859
        %1023 = vmatmul.bf16.gmra.mxu0 %v404
        %v1024 = vpop.f32.mrf.mxu0
        %v1025 = vadd.f32 %v1011, %v1024
        %v1026 = vpop.f32.mrf.mxu0
        %v1027 = vadd.f32 %v1013, %v1026
        %1028 = vdwg.mxu0
        %1029 = vmatpush.bf16.msra.mxu0 %v874
        %1030 = vmatpush.bf16.msra.mxu0 %v873
        %1031 = vmatpush.bf16.msra.mxu0 %v872
        %1032 = vmatpush.bf16.msra.mxu0 %v871
        %1033 = vmatpush.bf16.msra.mxu0 %v870
        %1034 = vmatpush.bf16.msra.mxu0 %v869
        %1035 = vmatpush.bf16.msra.mxu0 %v868
        %1036 = vmatpush.bf16.msra.mxu0 %v867
        %1037 = vmatmul.bf16.gmra.mxu0 %v405
        %v1038 = vpop.f32.mrf.mxu0
        %v1039 = vadd.f32 %v1025, %v1038
        %v1040 = vpop.f32.mrf.mxu0
        %v1041 = vadd.f32 %v1027, %v1040
        %1042 = vdwg.mxu0
        %1043 = vmatpush.bf16.msra.mxu0 %v882
        %1044 = vmatpush.bf16.msra.mxu0 %v881
        %1045 = vmatpush.bf16.msra.mxu0 %v880
        %1046 = vmatpush.bf16.msra.mxu0 %v879
        %1047 = vmatpush.bf16.msra.mxu0 %v878
        %1048 = vmatpush.bf16.msra.mxu0 %v877
        %1049 = vmatpush.bf16.msra.mxu0 %v876
        %1050 = vmatpush.bf16.msra.mxu0 %v875
        %1051 = vmatmul.bf16.gmra.mxu0 %v406
        %v1052 = vpop.f32.mrf.mxu0
        %v1053 = vadd.f32 %v1039, %v1052
        %v1054 = vpop.f32.mrf.mxu0
        %v1055 = vadd.f32 %v1041, %v1054
        %1056 = vdwg.mxu0
        %1057 = vmatpush.bf16.msra.mxu0 %v890
        %1058 = vmatpush.bf16.msra.mxu0 %v889
        %1059 = vmatpush.bf16.msra.mxu0 %v888
        %1060 = vmatpush.bf16.msra.mxu0 %v887
        %1061 = vmatpush.bf16.msra.mxu0 %v886
        %1062 = vmatpush.bf16.msra.mxu0 %v885
        %1063 = vmatpush.bf16.msra.mxu0 %v884
        %1064 = vmatpush.bf16.msra.mxu0 %v883
        %1065 = vmatmul.bf16.gmra.mxu0 %v407
        %v1066 = vpop.f32.mrf.mxu0
        %v1067 = vadd.f32 %v1053, %v1066
        %v1068 = vpop.f32.mrf.mxu0
        %v1069 = vadd.f32 %v1055, %v1068
        %1070 = vdwg.mxu0
        %1071 = vmatpush.bf16.msra.mxu0 %v898
        %1072 = vmatpush.bf16.msra.mxu0 %v897
        %1073 = vmatpush.bf16.msra.mxu0 %v896
        %1074 = vmatpush.bf16.msra.mxu0 %v895
        %1075 = vmatpush.bf16.msra.mxu0 %v894
        %1076 = vmatpush.bf16.msra.mxu0 %v893
        %1077 = vmatpush.bf16.msra.mxu0 %v892
        %1078 = vmatpush.bf16.msra.mxu0 %v891
        %1079 = vmatmul.bf16.gmra.mxu0 %v408
        %v1080 = vpop.f32.mrf.mxu0
        %v1081 = vadd.f32 %v1067, %v1080
        %v1082 = vpop.f32.mrf.mxu0
        %v1083 = vadd.f32 %v1069, %v1082
        %1084 = vdwg.mxu0
        %1085 = vmatpush.bf16.msra.mxu0 %v906
        %1086 = vmatpush.bf16.msra.mxu0 %v905
        %1087 = vmatpush.bf16.msra.mxu0 %v904
        %1088 = vmatpush.bf16.msra.mxu0 %v903
        %1089 = vmatpush.bf16.msra.mxu0 %v902
        %1090 = vmatpush.bf16.msra.mxu0 %v901
        %1091 = vmatpush.bf16.msra.mxu0 %v900
        %1092 = vmatpush.bf16.msra.mxu0 %v899
        %1093 = vmatmul.bf16.gmra.mxu0 %v409
        %v1094 = vpop.f32.mrf.mxu0
        %v1095 = vadd.f32 %v1081, %v1094
        %v1096 = vpop.f32.mrf.mxu0
        %v1097 = vadd.f32 %v1083, %v1096
        %1098 = vdwg.mxu0
        %1099 = vmatpush.bf16.msra.mxu0 %v914
        %1100 = vmatpush.bf16.msra.mxu0 %v913
        %1101 = vmatpush.bf16.msra.mxu0 %v912
        %1102 = vmatpush.bf16.msra.mxu0 %v911
        %1103 = vmatpush.bf16.msra.mxu0 %v910
        %1104 = vmatpush.bf16.msra.mxu0 %v909
        %1105 = vmatpush.bf16.msra.mxu0 %v908
        %1106 = vmatpush.bf16.msra.mxu0 %v907
        %1107 = vmatmul.bf16.gmra.mxu0 %v410
        %v1108 = vpop.f32.mrf.mxu0
        %v1109 = vadd.f32 %v1095, %v1108
        %v1110 = vpop.f32.mrf.mxu0
        %v1111 = vadd.f32 %v1097, %v1110
        %1112 = vdwg.mxu0
        %v1113 = vld [vmem:[%s3] sm:$0x1]
        %v1115 = vperm.slane %v1113, 0
        %v1117 = vmul.f32 %v1109, %v1115
        %v1118 = vmul.f32 %v1111, %v1115
        %v1119 = vld [vmem:[%s4] sm:$0x1]
        %v1121 = vperm.slane %v1119, 0
        %v1123 = vadd.f32 %v1117, %v1121
        %v1124 = vadd.f32 %v1118, %v1121
        %v1125 = vxor.u32 %v1123, 2147483648
        %v1126 = vxor.u32 %v1124, 2147483648
        %v1127 = vmul.f32 %v1125, 1.442695
        %v1128 = vpow.pop %v1127
        %v1129 = vmul.f32 %v1126, 1.442695
        %v1130 = vpow.pop %v1129
        %v1131 = vadd.f32 %v1128, 1.0
        %v1132 = vadd.f32 %v1130, 1.0
        %v1133 = vrcp.pop %v1131
        %v1134 = vmul.f32 %v1131, %v1133
        %v1135 = vsub.f32 1.0, %v1134
        %v1136 = vmul.f32 %v1133, %v1135
        %v1137 = vadd.f32 %v1133, %v1136
        %vm1138 = vweird.f32 %v1131
        %vm1139 = vweird.f32 %v1133
        %vm1140 = vmor %vm1138, %vm1139
        %v1141 = vsel %vm1140, %v1133, %v1137
        %v1142 = vand.u32 2147483647, %v1131
        %vm1143 = vcmp.eq.f32.partialorder %v1142, 8.507059e+37
        %v1144 = vand.u32 %v1131, 2147483648
        %v1145 = vor.u32 1.1754944e-38, %v1144
        %v1146 = vsel %vm1143, %v1145, %v1141
        %v1147 = vmul.f32 1.0, %v1146
        %v1148 = vrcp.pop %v1132
        %v1149 = vmul.f32 %v1132, %v1148
        %v1150 = vsub.f32 1.0, %v1149
        %v1151 = vmul.f32 %v1148, %v1150
        %v1152 = vadd.f32 %v1148, %v1151
        %vm1153 = vweird.f32 %v1132
        %vm1154 = vweird.f32 %v1148
        %vm1155 = vmor %vm1153, %vm1154
        %v1156 = vsel %vm1155, %v1148, %v1152
        %v1157 = vand.u32 2147483647, %v1132
        %vm1158 = vcmp.eq.f32.partialorder %v1157, 8.507059e+37
        %v1159 = vand.u32 %v1132, 2147483648
        %v1160 = vor.u32 1.1754944e-38, %v1159
        %v1161 = vsel %vm1158, %v1160, %v1156
        %v1162 = vmul.f32 1.0, %v1161
        %v1163 = vmul.f32 %v1123, %v1147
        %v1164 = vmul.f32 %v1124, %v1162
        %v1167 = vrot.slane %v1163, 7
        %v1168 = vrot.slane %v1164, 7
        %v1169 = vsel %vm336, %v1167, %v1168
        %v1172 = vsel %vm336, 0.0, %v1167
        %v1173 = vrot.slane %v1163, 1
        %v1174 = vrot.slane %v1164, 1
        %v1175 = vsel %vm343, %v1173, %v1174
        %v1178 = vsel %vm343, %v1174, 0.0
        %1180 = vrot.lane.b32.xlu0 %v1172, 8
        %v1181 = vpop.permute.xlu0 %1180
        %1182 = vrot.lane.b32.xlu0 %v1169, 8
        %v1183 = vpop.permute.xlu0 %1182
        %v1186 = vsel %vm357, 0.0, %v1181
        %v1187 = vsel %vm357, 0.0, %v1183
        %1188 = vrot.lane.b32.xlu0 %v1172, 120
        %v1189 = vpop.permute.xlu0 %1188
        %1190 = vrot.lane.b32.xlu0 %v1169, 120
        %v1191 = vpop.permute.xlu0 %1190
        %v1194 = vsel %vm366, %v1189, 0.0
        %v1195 = vsel %vm366, %v1191, 0.0
        %1196 = vrot.lane.b32.xlu0 %v1163, 8
        %v1197 = vpop.permute.xlu0 %1196
        %1198 = vrot.lane.b32.xlu0 %v1164, 8
        %v1199 = vpop.permute.xlu0 %1198
        %v1202 = vsel %vm357, 0.0, %v1197
        %v1203 = vsel %vm357, 0.0, %v1199
        %1204 = vrot.lane.b32.xlu0 %v1163, 120
        %v1205 = vpop.permute.xlu0 %1204
        %1206 = vrot.lane.b32.xlu0 %v1164, 120
        %v1207 = vpop.permute.xlu0 %1206
        %v1210 = vsel %vm366, %v1205, 0.0
        %v1211 = vsel %vm366, %v1207, 0.0
        %1213 = vrot.lane.b32.xlu0 %v1175, 8
        %v1214 = vpop.permute.xlu0 %1213
        %1215 = vrot.lane.b32.xlu0 %v1178, 8
        %v1216 = vpop.permute.xlu0 %1215
        %v1219 = vsel %vm357, 0.0, %v1214
        %v1220 = vsel %vm357, 0.0, %v1216
        %1221 = vrot.lane.b32.xlu0 %v1175, 120
        %v1222 = vpop.permute.xlu0 %1221
        %1223 = vrot.lane.b32.xlu0 %v1178, 120
        %v1224 = vpop.permute.xlu0 %1223
        %v1227 = vsel %vm366, %v1222, 0.0
        %v1228 = vsel %vm366, %v1224, 0.0
        %v1229 = vpack.c.bf16 %v1187, %v1186
        %v1230 = vpack.c.bf16 %v1169, %v1172
        %v1231 = vpack.c.bf16 %v1195, %v1194
        %v1232 = vpack.c.bf16 %v1203, %v1202
        %v1233 = vpack.c.bf16 %v1164, %v1163
        %v1234 = vpack.c.bf16 %v1211, %v1210
        %v1235 = vpack.c.bf16 %v1220, %v1219
        %v1236 = vpack.c.bf16 %v1178, %v1175
        %v1237 = vpack.c.bf16 %v1228, %v1227
        %v1238 = vld [vmem:[#allocation7] sm:$0xf]
        %v1239 = vld [vmem:[#allocation7 + $0x4] sm:$0xf]
        %v1240 = vld [vmem:[#allocation7 + $0x8] sm:$0xf]
        %v1241 = vld [vmem:[#allocation7 + $0xc] sm:$0xf]
        %v1242 = vld [vmem:[#allocation7 + $0x10] sm:$0xf]
        %v1243 = vld [vmem:[#allocation7 + $0x14] sm:$0xf]
        %v1244 = vld [vmem:[#allocation7 + $0x18] sm:$0xf]
        %v1245 = vld [vmem:[#allocation7 + $0x1c] sm:$0xf]
        %v1246 = vld [vmem:[#allocation7 + $0x20] sm:$0xf]
        %v1247 = vld [vmem:[#allocation7 + $0x24] sm:$0xf]
        %v1248 = vld [vmem:[#allocation7 + $0x28] sm:$0xf]
        %v1249 = vld [vmem:[#allocation7 + $0x2c] sm:$0xf]
        %v1250 = vld [vmem:[#allocation7 + $0x30] sm:$0xf]
        %v1251 = vld [vmem:[#allocation7 + $0x34] sm:$0xf]
        %v1252 = vld [vmem:[#allocation7 + $0x38] sm:$0xf]
        %v1253 = vld [vmem:[#allocation7 + $0x3c] sm:$0xf]
        %v1254 = vld [vmem:[#allocation7 + $0x40] sm:$0xf]
        %v1255 = vld [vmem:[#allocation7 + $0x44] sm:$0xf]
        %v1256 = vld [vmem:[#allocation7 + $0x48] sm:$0xf]
        %v1257 = vld [vmem:[#allocation7 + $0x4c] sm:$0xf]
        %v1258 = vld [vmem:[#allocation7 + $0x50] sm:$0xf]
        %v1259 = vld [vmem:[#allocation7 + $0x54] sm:$0xf]
        %v1260 = vld [vmem:[#allocation7 + $0x58] sm:$0xf]
        %v1261 = vld [vmem:[#allocation7 + $0x5c] sm:$0xf]
        %v1262 = vld [vmem:[#allocation7 + $0x60] sm:$0xf]
        %v1263 = vld [vmem:[#allocation7 + $0x64] sm:$0xf]
        %v1264 = vld [vmem:[#allocation7 + $0x68] sm:$0xf]
        %v1265 = vld [vmem:[#allocation7 + $0x6c] sm:$0xf]
        %v1266 = vld [vmem:[#allocation7 + $0x70] sm:$0xf]
        %v1267 = vld [vmem:[#allocation7 + $0x74] sm:$0xf]
        %v1268 = vld [vmem:[#allocation7 + $0x78] sm:$0xf]
        %v1269 = vld [vmem:[#allocation7 + $0x7c] sm:$0xf]
        %v1270 = vld [vmem:[#allocation7 + $0x80] sm:$0xf]
        %v1271 = vld [vmem:[#allocation7 + $0x84] sm:$0xf]
        %v1272 = vld [vmem:[#allocation7 + $0x88] sm:$0xf]
        %v1273 = vld [vmem:[#allocation7 + $0x8c] sm:$0xf]
        %v1274 = vld [vmem:[#allocation7 + $0x90] sm:$0xf]
        %v1275 = vld [vmem:[#allocation7 + $0x94] sm:$0xf]
        %v1276 = vld [vmem:[#allocation7 + $0x98] sm:$0xf]
        %v1277 = vld [vmem:[#allocation7 + $0x9c] sm:$0xf]
        %v1278 = vld [vmem:[#allocation7 + $0xa0] sm:$0xf]
        %v1279 = vld [vmem:[#allocation7 + $0xa4] sm:$0xf]
        %v1280 = vld [vmem:[#allocation7 + $0xa8] sm:$0xf]
        %v1281 = vld [vmem:[#allocation7 + $0xac] sm:$0xf]
        %v1282 = vld [vmem:[#allocation7 + $0xb0] sm:$0xf]
        %v1283 = vld [vmem:[#allocation7 + $0xb4] sm:$0xf]
        %v1284 = vld [vmem:[#allocation7 + $0xb8] sm:$0xf]
        %v1285 = vld [vmem:[#allocation7 + $0xbc] sm:$0xf]
        %v1286 = vld [vmem:[#allocation7 + $0xc0] sm:$0xf]
        %v1287 = vld [vmem:[#allocation7 + $0xc4] sm:$0xf]
        %v1288 = vld [vmem:[#allocation7 + $0xc8] sm:$0xf]
        %v1289 = vld [vmem:[#allocation7 + $0xcc] sm:$0xf]
        %v1290 = vld [vmem:[#allocation7 + $0xd0] sm:$0xf]
        %v1291 = vld [vmem:[#allocation7 + $0xd4] sm:$0xf]
        %v1292 = vld [vmem:[#allocation7 + $0xd8] sm:$0xf]
        %v1293 = vld [vmem:[#allocation7 + $0xdc] sm:$0xf]
        %v1294 = vld [vmem:[#allocation7 + $0xe0] sm:$0xf]
        %v1295 = vld [vmem:[#allocation7 + $0xe4] sm:$0xf]
        %v1296 = vld [vmem:[#allocation7 + $0xe8] sm:$0xf]
        %v1297 = vld [vmem:[#allocation7 + $0xec] sm:$0xf]
        %v1298 = vld [vmem:[#allocation7 + $0xf0] sm:$0xf]
        %v1299 = vld [vmem:[#allocation7 + $0xf4] sm:$0xf]
        %v1300 = vld [vmem:[#allocation7 + $0xf8] sm:$0xf]
        %v1301 = vld [vmem:[#allocation7 + $0xfc] sm:$0xf]
        %v1302 = vld [vmem:[#allocation7 + $0x100] sm:$0xf]
        %v1303 = vld [vmem:[#allocation7 + $0x104] sm:$0xf]
        %v1304 = vld [vmem:[#allocation7 + $0x108] sm:$0xf]
        %v1305 = vld [vmem:[#allocation7 + $0x10c] sm:$0xf]
        %v1306 = vld [vmem:[#allocation7 + $0x110] sm:$0xf]
        %v1307 = vld [vmem:[#allocation7 + $0x114] sm:$0xf]
        %v1308 = vld [vmem:[#allocation7 + $0x118] sm:$0xf]
        %v1309 = vld [vmem:[#allocation7 + $0x11c] sm:$0xf]
        %v1310 = vld [vmem:[#allocation7 + $0x120] sm:$0xf]
        %v1311 = vld [vmem:[#allocation7 + $0x124] sm:$0xf]
        %v1312 = vld [vmem:[#allocation7 + $0x128] sm:$0xf]
        %v1313 = vld [vmem:[#allocation7 + $0x12c] sm:$0xf]
        %v1314 = vld [vmem:[#allocation7 + $0x130] sm:$0xf]
        %v1315 = vld [vmem:[#allocation7 + $0x134] sm:$0xf]
        %v1316 = vld [vmem:[#allocation7 + $0x138] sm:$0xf]
        %v1317 = vld [vmem:[#allocation7 + $0x13c] sm:$0xf]
        %v1318 = vld [vmem:[#allocation7 + $0x140] sm:$0xf]
        %v1319 = vld [vmem:[#allocation7 + $0x144] sm:$0xf]
        %v1320 = vld [vmem:[#allocation7 + $0x148] sm:$0xf]
        %v1321 = vld [vmem:[#allocation7 + $0x14c] sm:$0xf]
        %v1322 = vld [vmem:[#allocation7 + $0x150] sm:$0xf]
        %v1323 = vld [vmem:[#allocation7 + $0x154] sm:$0xf]
        %v1324 = vld [vmem:[#allocation7 + $0x158] sm:$0xf]
        %v1325 = vld [vmem:[#allocation7 + $0x15c] sm:$0xf]
        %v1326 = vld [vmem:[#allocation7 + $0x160] sm:$0xf]
        %v1327 = vld [vmem:[#allocation7 + $0x164] sm:$0xf]
        %v1328 = vld [vmem:[#allocation7 + $0x168] sm:$0xf]
        %v1329 = vld [vmem:[#allocation7 + $0x16c] sm:$0xf]
        %v1330 = vld [vmem:[#allocation7 + $0x170] sm:$0xf]
        %v1331 = vld [vmem:[#allocation7 + $0x174] sm:$0xf]
        %v1332 = vld [vmem:[#allocation7 + $0x178] sm:$0xf]
        %v1333 = vld [vmem:[#allocation7 + $0x17c] sm:$0xf]
        %v1334 = vld [vmem:[#allocation7 + $0x180] sm:$0xf]
        %v1335 = vld [vmem:[#allocation7 + $0x184] sm:$0xf]
        %v1336 = vld [vmem:[#allocation7 + $0x188] sm:$0xf]
        %v1337 = vld [vmem:[#allocation7 + $0x18c] sm:$0xf]
        %v1338 = vld [vmem:[#allocation7 + $0x190] sm:$0xf]
        %v1339 = vld [vmem:[#allocation7 + $0x194] sm:$0xf]
        %v1340 = vld [vmem:[#allocation7 + $0x198] sm:$0xf]
        %v1341 = vld [vmem:[#allocation7 + $0x19c] sm:$0xf]
        %v1342 = vld [vmem:[#allocation7 + $0x1a0] sm:$0xf]
        %v1343 = vld [vmem:[#allocation7 + $0x1a4] sm:$0xf]
        %v1344 = vld [vmem:[#allocation7 + $0x1a8] sm:$0xf]
        %v1345 = vld [vmem:[#allocation7 + $0x1ac] sm:$0xf]
        %v1346 = vld [vmem:[#allocation7 + $0x1b0] sm:$0xf]
        %v1347 = vld [vmem:[#allocation7 + $0x1b4] sm:$0xf]
        %v1348 = vld [vmem:[#allocation7 + $0x1b8] sm:$0xf]
        %v1349 = vld [vmem:[#allocation7 + $0x1bc] sm:$0xf]
        %v1350 = vld [vmem:[#allocation7 + $0x1c0] sm:$0xf]
        %v1351 = vld [vmem:[#allocation7 + $0x1c4] sm:$0xf]
        %v1352 = vld [vmem:[#allocation7 + $0x1c8] sm:$0xf]
        %v1353 = vld [vmem:[#allocation7 + $0x1cc] sm:$0xf]
        %v1354 = vld [vmem:[#allocation7 + $0x1d0] sm:$0xf]
        %v1355 = vld [vmem:[#allocation7 + $0x1d4] sm:$0xf]
        %v1356 = vld [vmem:[#allocation7 + $0x1d8] sm:$0xf]
        %v1357 = vld [vmem:[#allocation7 + $0x1dc] sm:$0xf]
        %v1358 = vld [vmem:[#allocation7 + $0x1e0] sm:$0xf]
        %v1359 = vld [vmem:[#allocation7 + $0x1e4] sm:$0xf]
        %v1360 = vld [vmem:[#allocation7 + $0x1e8] sm:$0xf]
        %v1361 = vld [vmem:[#allocation7 + $0x1ec] sm:$0xf]
        %v1362 = vld [vmem:[#allocation7 + $0x1f0] sm:$0xf]
        %v1363 = vld [vmem:[#allocation7 + $0x1f4] sm:$0xf]
        %v1364 = vld [vmem:[#allocation7 + $0x1f8] sm:$0xf]
        %v1365 = vld [vmem:[#allocation7 + $0x1fc] sm:$0xf]
        %v1366 = vld [vmem:[#allocation7 + $0x200] sm:$0xf]
        %v1367 = vld [vmem:[#allocation7 + $0x204] sm:$0xf]
        %v1368 = vld [vmem:[#allocation7 + $0x208] sm:$0xf]
        %v1369 = vld [vmem:[#allocation7 + $0x20c] sm:$0xf]
        %v1370 = vld [vmem:[#allocation7 + $0x210] sm:$0xf]
        %v1371 = vld [vmem:[#allocation7 + $0x214] sm:$0xf]
        %v1372 = vld [vmem:[#allocation7 + $0x218] sm:$0xf]
        %v1373 = vld [vmem:[#allocation7 + $0x21c] sm:$0xf]
        %v1374 = vld [vmem:[#allocation7 + $0x220] sm:$0xf]
        %v1375 = vld [vmem:[#allocation7 + $0x224] sm:$0xf]
        %v1376 = vld [vmem:[#allocation7 + $0x228] sm:$0xf]
        %v1377 = vld [vmem:[#allocation7 + $0x22c] sm:$0xf]
        %v1378 = vld [vmem:[#allocation7 + $0x230] sm:$0xf]
        %v1379 = vld [vmem:[#allocation7 + $0x234] sm:$0xf]
        %v1380 = vld [vmem:[#allocation7 + $0x238] sm:$0xf]
        %v1381 = vld [vmem:[#allocation7 + $0x23c] sm:$0xf]
        %v1526 = vunpack.c.l.b16 %v1238
        %v1527 = vunpack.c.l.b16 %v1239
        %v1528 = vunpack.c.l.b16 %v1240
        %v1529 = vunpack.c.l.b16 %v1241
        %v1530 = vunpack.c.l.b16 %v1242
        %v1531 = vunpack.c.l.b16 %v1243
        %v1532 = vunpack.c.l.b16 %v1244
        %v1533 = vunpack.c.l.b16 %v1245
        %v1534 = vunpack.c.l.b16 %v1246
        %v1535 = vunpack.c.l.b16 %v1247
        %v1536 = vunpack.c.l.b16 %v1248
        %v1537 = vunpack.c.l.b16 %v1249
        %v1538 = vunpack.c.l.b16 %v1250
        %v1539 = vunpack.c.l.b16 %v1251
        %v1540 = vunpack.c.l.b16 %v1252
        %v1541 = vunpack.c.l.b16 %v1253
        %v1542 = vunpack.c.l.b16 %v1254
        %v1543 = vunpack.c.l.b16 %v1255
        %v1544 = vunpack.c.l.b16 %v1256
        %v1545 = vunpack.c.l.b16 %v1257
        %v1546 = vunpack.c.l.b16 %v1258
        %v1547 = vunpack.c.l.b16 %v1259
        %v1548 = vunpack.c.l.b16 %v1260
        %v1549 = vunpack.c.l.b16 %v1261
        %v1550 = vunpack.c.l.b16 %v1262
        %v1551 = vunpack.c.l.b16 %v1263
        %v1552 = vunpack.c.l.b16 %v1264
        %v1553 = vunpack.c.l.b16 %v1265
        %v1554 = vunpack.c.l.b16 %v1266
        %v1555 = vunpack.c.l.b16 %v1267
        %v1556 = vunpack.c.l.b16 %v1268
        %v1557 = vunpack.c.l.b16 %v1269
        %v1558 = vunpack.c.l.b16 %v1270
        %v1559 = vunpack.c.l.b16 %v1271
        %v1560 = vunpack.c.l.b16 %v1272
        %v1561 = vunpack.c.l.b16 %v1273
        %v1562 = vunpack.c.l.b16 %v1274
        %v1563 = vunpack.c.l.b16 %v1275
        %v1564 = vunpack.c.l.b16 %v1276
        %v1565 = vunpack.c.l.b16 %v1277
        %v1566 = vunpack.c.l.b16 %v1278
        %v1567 = vunpack.c.l.b16 %v1279
        %v1568 = vunpack.c.l.b16 %v1280
        %v1569 = vunpack.c.l.b16 %v1281
        %v1570 = vunpack.c.l.b16 %v1282
        %v1571 = vunpack.c.l.b16 %v1283
        %v1572 = vunpack.c.l.b16 %v1284
        %v1573 = vunpack.c.l.b16 %v1285
        %v1574 = vunpack.c.l.b16 %v1286
        %v1575 = vunpack.c.l.b16 %v1287
        %v1576 = vunpack.c.l.b16 %v1288
        %v1577 = vunpack.c.l.b16 %v1289
        %v1578 = vunpack.c.l.b16 %v1290
        %v1579 = vunpack.c.l.b16 %v1291
        %v1580 = vunpack.c.l.b16 %v1292
        %v1581 = vunpack.c.l.b16 %v1293
        %v1582 = vunpack.c.l.b16 %v1294
        %v1583 = vunpack.c.l.b16 %v1295
        %v1584 = vunpack.c.l.b16 %v1296
        %v1585 = vunpack.c.l.b16 %v1297
        %v1586 = vunpack.c.l.b16 %v1298
        %v1587 = vunpack.c.l.b16 %v1299
        %v1588 = vunpack.c.l.b16 %v1300
        %v1589 = vunpack.c.l.b16 %v1301
        %v1590 = vunpack.c.l.b16 %v1302
        %v1591 = vunpack.c.l.b16 %v1303
        %v1592 = vunpack.c.l.b16 %v1304
        %v1593 = vunpack.c.l.b16 %v1305
        %v1594 = vunpack.c.l.b16 %v1306
        %v1595 = vunpack.c.l.b16 %v1307
        %v1596 = vunpack.c.l.b16 %v1308
        %v1597 = vunpack.c.l.b16 %v1309
        %v1598 = vunpack.c.l.b16 %v1310
        %v1599 = vunpack.c.l.b16 %v1311
        %v1600 = vunpack.c.l.b16 %v1312
        %v1601 = vunpack.c.l.b16 %v1313
        %v1602 = vunpack.c.l.b16 %v1314
        %v1603 = vunpack.c.l.b16 %v1315
        %v1604 = vunpack.c.l.b16 %v1316
        %v1605 = vunpack.c.l.b16 %v1317
        %v1606 = vunpack.c.l.b16 %v1318
        %v1607 = vunpack.c.l.b16 %v1319
        %v1608 = vunpack.c.l.b16 %v1320
        %v1609 = vunpack.c.l.b16 %v1321
        %v1610 = vunpack.c.l.b16 %v1322
        %v1611 = vunpack.c.l.b16 %v1323
        %v1612 = vunpack.c.l.b16 %v1324
        %v1613 = vunpack.c.l.b16 %v1325
        %v1614 = vunpack.c.l.b16 %v1326
        %v1615 = vunpack.c.l.b16 %v1327
        %v1616 = vunpack.c.l.b16 %v1328
        %v1617 = vunpack.c.l.b16 %v1329
        %v1618 = vunpack.c.l.b16 %v1330
        %v1619 = vunpack.c.l.b16 %v1331
        %v1620 = vunpack.c.l.b16 %v1332
        %v1621 = vunpack.c.l.b16 %v1333
        %v1622 = vunpack.c.l.b16 %v1334
        %v1623 = vunpack.c.l.b16 %v1335
        %v1624 = vunpack.c.l.b16 %v1336
        %v1625 = vunpack.c.l.b16 %v1337
        %v1626 = vunpack.c.l.b16 %v1338
        %v1627 = vunpack.c.l.b16 %v1339
        %v1628 = vunpack.c.l.b16 %v1340
        %v1629 = vunpack.c.l.b16 %v1341
        %v1630 = vunpack.c.l.b16 %v1342
        %v1631 = vunpack.c.l.b16 %v1343
        %v1632 = vunpack.c.l.b16 %v1344
        %v1633 = vunpack.c.l.b16 %v1345
        %v1634 = vunpack.c.l.b16 %v1346
        %v1635 = vunpack.c.l.b16 %v1347
        %v1636 = vunpack.c.l.b16 %v1348
        %v1637 = vunpack.c.l.b16 %v1349
        %v1638 = vunpack.c.l.b16 %v1350
        %v1639 = vunpack.c.l.b16 %v1351
        %v1640 = vunpack.c.l.b16 %v1352
        %v1641 = vunpack.c.l.b16 %v1353
        %v1642 = vunpack.c.l.b16 %v1354
        %v1643 = vunpack.c.l.b16 %v1355
        %v1644 = vunpack.c.l.b16 %v1356
        %v1645 = vunpack.c.l.b16 %v1357
        %v1646 = vunpack.c.l.b16 %v1358
        %v1647 = vunpack.c.l.b16 %v1359
        %v1648 = vunpack.c.l.b16 %v1360
        %v1649 = vunpack.c.l.b16 %v1361
        %v1650 = vunpack.c.l.b16 %v1362
        %v1651 = vunpack.c.l.b16 %v1363
        %v1652 = vunpack.c.l.b16 %v1364
        %v1653 = vunpack.c.l.b16 %v1365
        %v1654 = vunpack.c.l.b16 %v1366
        %v1655 = vunpack.c.l.b16 %v1367
        %v1656 = vunpack.c.l.b16 %v1368
        %v1657 = vunpack.c.l.b16 %v1369
        %v1658 = vunpack.c.l.b16 %v1370
        %v1659 = vunpack.c.l.b16 %v1371
        %v1660 = vunpack.c.l.b16 %v1372
        %v1661 = vunpack.c.l.b16 %v1373
        %v1662 = vunpack.c.l.b16 %v1374
        %v1663 = vunpack.c.l.b16 %v1375
        %v1664 = vunpack.c.l.b16 %v1376
        %v1665 = vunpack.c.l.b16 %v1377
        %v1666 = vunpack.c.l.b16 %v1378
        %v1667 = vunpack.c.l.b16 %v1379
        %v1668 = vunpack.c.l.b16 %v1380
        %v1669 = vunpack.c.l.b16 %v1381
        %v1670 = vpack.c.b16 %v1527, %v1526
        %v1671 = vpack.c.b16 %v1529, %v1528
        %v1672 = vpack.c.b16 %v1531, %v1530
        %v1673 = vpack.c.b16 %v1533, %v1532
        %v1674 = vpack.c.b16 %v1535, %v1534
        %v1675 = vpack.c.b16 %v1537, %v1536
        %v1676 = vpack.c.b16 %v1539, %v1538
        %v1677 = vpack.c.b16 %v1541, %v1540
        %v1678 = vpack.c.b16 %v1543, %v1542
        %v1679 = vpack.c.b16 %v1545, %v1544
        %v1680 = vpack.c.b16 %v1547, %v1546
        %v1681 = vpack.c.b16 %v1549, %v1548
        %v1682 = vpack.c.b16 %v1551, %v1550
        %v1683 = vpack.c.b16 %v1553, %v1552
        %v1684 = vpack.c.b16 %v1555, %v1554
        %v1685 = vpack.c.b16 %v1557, %v1556
        %v1686 = vpack.c.b16 %v1559, %v1558
        %v1687 = vpack.c.b16 %v1561, %v1560
        %v1688 = vpack.c.b16 %v1563, %v1562
        %v1689 = vpack.c.b16 %v1565, %v1564
        %v1690 = vpack.c.b16 %v1567, %v1566
        %v1691 = vpack.c.b16 %v1569, %v1568
        %v1692 = vpack.c.b16 %v1571, %v1570
        %v1693 = vpack.c.b16 %v1573, %v1572
        %v1694 = vpack.c.b16 %v1575, %v1574
        %v1695 = vpack.c.b16 %v1577, %v1576
        %v1696 = vpack.c.b16 %v1579, %v1578
        %v1697 = vpack.c.b16 %v1581, %v1580
        %v1698 = vpack.c.b16 %v1583, %v1582
        %v1699 = vpack.c.b16 %v1585, %v1584
        %v1700 = vpack.c.b16 %v1587, %v1586
        %v1701 = vpack.c.b16 %v1589, %v1588
        %v1702 = vpack.c.b16 %v1591, %v1590
        %v1703 = vpack.c.b16 %v1593, %v1592
        %v1704 = vpack.c.b16 %v1595, %v1594
        %v1705 = vpack.c.b16 %v1597, %v1596
        %v1706 = vpack.c.b16 %v1599, %v1598
        %v1707 = vpack.c.b16 %v1601, %v1600
        %v1708 = vpack.c.b16 %v1603, %v1602
        %v1709 = vpack.c.b16 %v1605, %v1604
        %v1710 = vpack.c.b16 %v1607, %v1606
        %v1711 = vpack.c.b16 %v1609, %v1608
        %v1712 = vpack.c.b16 %v1611, %v1610
        %v1713 = vpack.c.b16 %v1613, %v1612
        %v1714 = vpack.c.b16 %v1615, %v1614
        %v1715 = vpack.c.b16 %v1617, %v1616
        %v1716 = vpack.c.b16 %v1619, %v1618
        %v1717 = vpack.c.b16 %v1621, %v1620
        %v1718 = vpack.c.b16 %v1623, %v1622
        %v1719 = vpack.c.b16 %v1625, %v1624
        %v1720 = vpack.c.b16 %v1627, %v1626
        %v1721 = vpack.c.b16 %v1629, %v1628
        %v1722 = vpack.c.b16 %v1631, %v1630
        %v1723 = vpack.c.b16 %v1633, %v1632
        %v1724 = vpack.c.b16 %v1635, %v1634
        %v1725 = vpack.c.b16 %v1637, %v1636
        %v1726 = vpack.c.b16 %v1639, %v1638
        %v1727 = vpack.c.b16 %v1641, %v1640
        %v1728 = vpack.c.b16 %v1643, %v1642
        %v1729 = vpack.c.b16 %v1645, %v1644
        %v1730 = vpack.c.b16 %v1647, %v1646
        %v1731 = vpack.c.b16 %v1649, %v1648
        %v1732 = vpack.c.b16 %v1651, %v1650
        %v1733 = vpack.c.b16 %v1653, %v1652
        %v1734 = vpack.c.b16 %v1655, %v1654
        %v1735 = vpack.c.b16 %v1657, %v1656
        %v1736 = vpack.c.b16 %v1659, %v1658
        %v1737 = vpack.c.b16 %v1661, %v1660
        %v1738 = vpack.c.b16 %v1663, %v1662
        %v1739 = vpack.c.b16 %v1665, %v1664
        %v1740 = vpack.c.b16 %v1667, %v1666
        %v1741 = vpack.c.b16 %v1669, %v1668
        %1814 = vmatpush.bf16.msra.mxu0 %v1677
        %1815 = vmatpush.bf16.msra.mxu0 %v1676
        %1816 = vmatpush.bf16.msra.mxu0 %v1675
        %1817 = vmatpush.bf16.msra.mxu0 %v1674
        %1818 = vmatpush.bf16.msra.mxu0 %v1673
        %1819 = vmatpush.bf16.msra.mxu0 %v1672
        %1820 = vmatpush.bf16.msra.mxu0 %v1671
        %1821 = vmatpush.bf16.msra.mxu0 %v1670
        %1822 = vmatmul.bf16.gmra.mxu0 %v1229
        %v1823 = vpop.f32.mrf.mxu0
        %v1824 = vadd.f32 0.0, %v1823
        %v1825 = vpop.f32.mrf.mxu0
        %v1826 = vadd.f32 0.0, %v1825
        %1827 = vdwg.mxu0
        %1828 = vmatpush.bf16.msra.mxu0 %v1685
        %1829 = vmatpush.bf16.msra.mxu0 %v1684
        %1830 = vmatpush.bf16.msra.mxu0 %v1683
        %1831 = vmatpush.bf16.msra.mxu0 %v1682
        %1832 = vmatpush.bf16.msra.mxu0 %v1681
        %1833 = vmatpush.bf16.msra.mxu0 %v1680
        %1834 = vmatpush.bf16.msra.mxu0 %v1679
        %1835 = vmatpush.bf16.msra.mxu0 %v1678
        %1836 = vmatmul.bf16.gmra.mxu0 %v1230
        %v1837 = vpop.f32.mrf.mxu0
        %v1838 = vadd.f32 %v1824, %v1837
        %v1839 = vpop.f32.mrf.mxu0
        %v1840 = vadd.f32 %v1826, %v1839
        %1841 = vdwg.mxu0
        %1842 = vmatpush.bf16.msra.mxu0 %v1693
        %1843 = vmatpush.bf16.msra.mxu0 %v1692
        %1844 = vmatpush.bf16.msra.mxu0 %v1691
        %1845 = vmatpush.bf16.msra.mxu0 %v1690
        %1846 = vmatpush.bf16.msra.mxu0 %v1689
        %1847 = vmatpush.bf16.msra.mxu0 %v1688
        %1848 = vmatpush.bf16.msra.mxu0 %v1687
        %1849 = vmatpush.bf16.msra.mxu0 %v1686
        %1850 = vmatmul.bf16.gmra.mxu0 %v1231
        %v1851 = vpop.f32.mrf.mxu0
        %v1852 = vadd.f32 %v1838, %v1851
        %v1853 = vpop.f32.mrf.mxu0
        %v1854 = vadd.f32 %v1840, %v1853
        %1855 = vdwg.mxu0
        %1856 = vmatpush.bf16.msra.mxu0 %v1701
        %1857 = vmatpush.bf16.msra.mxu0 %v1700
        %1858 = vmatpush.bf16.msra.mxu0 %v1699
        %1859 = vmatpush.bf16.msra.mxu0 %v1698
        %1860 = vmatpush.bf16.msra.mxu0 %v1697
        %1861 = vmatpush.bf16.msra.mxu0 %v1696
        %1862 = vmatpush.bf16.msra.mxu0 %v1695
        %1863 = vmatpush.bf16.msra.mxu0 %v1694
        %1864 = vmatmul.bf16.gmra.mxu0 %v1232
        %v1865 = vpop.f32.mrf.mxu0
        %v1866 = vadd.f32 %v1852, %v1865
        %v1867 = vpop.f32.mrf.mxu0
        %v1868 = vadd.f32 %v1854, %v1867
        %1869 = vdwg.mxu0
        %1870 = vmatpush.bf16.msra.mxu0 %v1709
        %1871 = vmatpush.bf16.msra.mxu0 %v1708
        %1872 = vmatpush.bf16.msra.mxu0 %v1707
        %1873 = vmatpush.bf16.msra.mxu0 %v1706
        %1874 = vmatpush.bf16.msra.mxu0 %v1705
        %1875 = vmatpush.bf16.msra.mxu0 %v1704
        %1876 = vmatpush.bf16.msra.mxu0 %v1703
        %1877 = vmatpush.bf16.msra.mxu0 %v1702
        %1878 = vmatmul.bf16.gmra.mxu0 %v1233
        %v1879 = vpop.f32.mrf.mxu0
        %v1880 = vadd.f32 %v1866, %v1879
        %v1881 = vpop.f32.mrf.mxu0
        %v1882 = vadd.f32 %v1868, %v1881
        %1883 = vdwg.mxu0
        %1884 = vmatpush.bf16.msra.mxu0 %v1717
        %1885 = vmatpush.bf16.msra.mxu0 %v1716
        %1886 = vmatpush.bf16.msra.mxu0 %v1715
        %1887 = vmatpush.bf16.msra.mxu0 %v1714
        %1888 = vmatpush.bf16.msra.mxu0 %v1713
        %1889 = vmatpush.bf16.msra.mxu0 %v1712
        %1890 = vmatpush.bf16.msra.mxu0 %v1711
        %1891 = vmatpush.bf16.msra.mxu0 %v1710
        %1892 = vmatmul.bf16.gmra.mxu0 %v1234
        %v1893 = vpop.f32.mrf.mxu0
        %v1894 = vadd.f32 %v1880, %v1893
        %v1895 = vpop.f32.mrf.mxu0
        %v1896 = vadd.f32 %v1882, %v1895
        %1897 = vdwg.mxu0
        %1898 = vmatpush.bf16.msra.mxu0 %v1725
        %1899 = vmatpush.bf16.msra.mxu0 %v1724
        %1900 = vmatpush.bf16.msra.mxu0 %v1723
        %1901 = vmatpush.bf16.msra.mxu0 %v1722
        %1902 = vmatpush.bf16.msra.mxu0 %v1721
        %1903 = vmatpush.bf16.msra.mxu0 %v1720
        %1904 = vmatpush.bf16.msra.mxu0 %v1719
        %1905 = vmatpush.bf16.msra.mxu0 %v1718
        %1906 = vmatmul.bf16.gmra.mxu0 %v1235
        %v1907 = vpop.f32.mrf.mxu0
        %v1908 = vadd.f32 %v1894, %v1907
        %v1909 = vpop.f32.mrf.mxu0
        %v1910 = vadd.f32 %v1896, %v1909
        %1911 = vdwg.mxu0
        %1912 = vmatpush.bf16.msra.mxu0 %v1733
        %1913 = vmatpush.bf16.msra.mxu0 %v1732
        %1914 = vmatpush.bf16.msra.mxu0 %v1731
        %1915 = vmatpush.bf16.msra.mxu0 %v1730
        %1916 = vmatpush.bf16.msra.mxu0 %v1729
        %1917 = vmatpush.bf16.msra.mxu0 %v1728
        %1918 = vmatpush.bf16.msra.mxu0 %v1727
        %1919 = vmatpush.bf16.msra.mxu0 %v1726
        %1920 = vmatmul.bf16.gmra.mxu0 %v1236
        %v1921 = vpop.f32.mrf.mxu0
        %v1922 = vadd.f32 %v1908, %v1921
        %v1923 = vpop.f32.mrf.mxu0
        %v1924 = vadd.f32 %v1910, %v1923
        %1925 = vdwg.mxu0
        %1926 = vmatpush.bf16.msra.mxu0 %v1741
        %1927 = vmatpush.bf16.msra.mxu0 %v1740
        %1928 = vmatpush.bf16.msra.mxu0 %v1739
        %1929 = vmatpush.bf16.msra.mxu0 %v1738
        %1930 = vmatpush.bf16.msra.mxu0 %v1737
        %1931 = vmatpush.bf16.msra.mxu0 %v1736
        %1932 = vmatpush.bf16.msra.mxu0 %v1735
        %1933 = vmatpush.bf16.msra.mxu0 %v1734
        %1934 = vmatmul.bf16.gmra.mxu0 %v1237
        %v1935 = vpop.f32.mrf.mxu0
        %v1936 = vadd.f32 %v1922, %v1935
        %v1937 = vpop.f32.mrf.mxu0
        %v1938 = vadd.f32 %v1924, %v1937
        %1939 = vdwg.mxu0
        %v1940 = vld [vmem:[%s5] sm:$0x1]
        %v1942 = vperm.slane %v1940, 0
        %v1944 = vmul.f32 %v1936, %v1942
        %v1945 = vmul.f32 %v1938, %v1942
        %v1946 = vld [vmem:[%s6] sm:$0x1]
        %v1948 = vperm.slane %v1946, 0
        %v1950 = vadd.f32 %v1944, %v1948
        %v1951 = vadd.f32 %v1945, %v1948
        %v1952 = vadd.f32 %v1950, %v332
        %v1953 = vadd.f32 %v1951, %v333
        %v1954 = vxor.u32 %v1952, 2147483648
        %v1955 = vxor.u32 %v1953, 2147483648
        %v1956 = vmul.f32 %v1954, 1.442695
        %v1957 = vpow.pop %v1956
        %v1958 = vmul.f32 %v1955, 1.442695
        %v1959 = vpow.pop %v1958
        %v1960 = vadd.f32 %v1957, 1.0
        %v1961 = vadd.f32 %v1959, 1.0
        %v1962 = vrcp.pop %v1960
        %v1963 = vmul.f32 %v1960, %v1962
        %v1964 = vsub.f32 1.0, %v1963
        %v1965 = vmul.f32 %v1962, %v1964
        %v1966 = vadd.f32 %v1962, %v1965
        %vm1967 = vweird.f32 %v1960
        %vm1968 = vweird.f32 %v1962
        %vm1969 = vmor %vm1967, %vm1968
        %v1970 = vsel %vm1969, %v1962, %v1966
        %v1971 = vand.u32 2147483647, %v1960
        %vm1972 = vcmp.eq.f32.partialorder %v1971, 8.507059e+37
        %v1973 = vand.u32 %v1960, 2147483648
        %v1974 = vor.u32 1.1754944e-38, %v1973
        %v1975 = vsel %vm1972, %v1974, %v1970
        %v1976 = vmul.f32 1.0, %v1975
        %v1977 = vrcp.pop %v1961
        %v1978 = vmul.f32 %v1961, %v1977
        %v1979 = vsub.f32 1.0, %v1978
        %v1980 = vmul.f32 %v1977, %v1979
        %v1981 = vadd.f32 %v1977, %v1980
        %vm1982 = vweird.f32 %v1961
        %vm1983 = vweird.f32 %v1977
        %vm1984 = vmor %vm1982, %vm1983
        %v1985 = vsel %vm1984, %v1977, %v1981
        %v1986 = vand.u32 2147483647, %v1961
        %vm1987 = vcmp.eq.f32.partialorder %v1986, 8.507059e+37
        %v1988 = vand.u32 %v1961, 2147483648
        %v1989 = vor.u32 1.1754944e-38, %v1988
        %v1990 = vsel %vm1987, %v1989, %v1985
        %v1991 = vmul.f32 1.0, %v1990
        %v1992 = vmul.f32 %v1952, %v1976
        %v1993 = vmul.f32 %v1953, %v1991
        %1994 = vst [vmem:[%s331] sm:$0xff] %v1992
        %1995 = vst [vmem:[%s331 + $0x8] sm:$0xff] %v1993
        %s1996 = sand.u32 %s185, 1
        %s1997 = scalar_lea.sflag [#allocation4], %s1996
        %s1998 = sand.u32 %s185, 1
        %s1999 = smul.addr %s1998, 16
        %s2000 = scalar_lea.vmem [#allocation8], %s1999
        // Predicated region
        $region61: #{tpu_custom_call.1} parent=47 // pred_check
          %p2001 = pneg %p195
        $region62: #{tpu_custom_call.1} parent=47 // pred_check_branch
          %2003 = sbr.rel (%p2001) target = $region64
        $region63: #{tpu_custom_call.1} parent=47 // pred_region
          %2005 = vsyncadd %s1997, 0
          %s2006 = smul.addr %s25, 2
          %s2007 = smul.addr %s2006, 8
          %s2008 = scalar_lea.hbm %s7, %s2007
          %s2009 = sshll.u32 %s2000, 4
          %s2010 = int_to_ptr.vmem [resolvable:$true] %s2009
          %s2011 = sshll.u32 %s2008, 4
          %s2012 = int_to_ptr.hbm [resolvable:$true] %s2011
          %2017 = dma.vmem_to_hbm [thread:$0]  %s2010, 256, %s2012, %s1997, 128, 128, 8
        $region64: #{tpu_custom_call.1} parent=47 // pred_fallthru
          _
      $region48: #{tpu_custom_call.1} parent=5 // pred_fallthru
        _
      %p2018 = scmp.le.s32.totalorder 2, %s20
      // Predicated region
      $region65: #{tpu_custom_call.1} parent=5 // pred_check
        %p2019 = pneg %p2018
      $region66: #{tpu_custom_call.1} parent=5 // pred_check_branch
        %2021 = sbr.rel (%p2019) target = $region68
      $region67: #{tpu_custom_call.1} parent=5 // pred_region
        %s2022 = ssub.s32 %s20, 2
        // Predicated region
        $region69: #{tpu_custom_call.1} parent=67 // pred_check
          %p2023 = pneg %p201
        $region70: #{tpu_custom_call.1} parent=67 // pred_check_branch
          %2025 = sbr.rel (%p2023) target = $region72
        $region71: #{tpu_custom_call.1} parent=67 // pred_region
          %s2026 = sand.u32 %s186, 1
          %s2027 = scalar_lea.sflag [#allocation4], %s2026
          %s2028 = sand.u32 %s186, 1
          %s2029 = smul.addr %s2028, 16
          %s2030 = scalar_lea.vmem [#allocation8], %s2029
          %2032 = dma.done %s2027, 256
        $region72: #{tpu_custom_call.1} parent=67 // pred_fallthru
          _
      $region68: #{tpu_custom_call.1} parent=5 // pred_fallthru
        _
    $region6: #{tpu_custom_call.1} parent=1 // loop_footer
      %s24 = sadd.s32 1, %s20
    $region7: #{tpu_custom_call.1} parent=1 // loop_footer_branch
      %19 = sbr.rel target = $region3
    $region8: #{tpu_custom_call.1} parent=1 // loop_exit
      _
    %2033 = vsyncpa [#allocation3], 1
    %s2034 = scalar_lea.sflag [#allocation3], 1
    %2035 = vsyncpa %s2034, 1
    %2036 = vsyncpa [#allocation6], 1
    %2037 = vsyncpa [#allocation4], 1
    %s2038 = scalar_lea.sflag [#allocation4], 1
    %2039 = vsyncpa %s2038, 1

</llo_original>
